<compile_context>
chip_gen: v6e
topology: v6e:2x2x1
jax: 0.10.0
libtpu: 0.0.40
codegen_flags: <defaults>
</compile_context>

<pallas_src>
import functools

import jax
import jax.numpy as jnp
from jax.experimental import pallas as pl
from jax.experimental.pallas import tpu as pltpu

K_HOPS = 2   # DGL TAGConv default
LANE = 128


def _round_up(x, m):
    return (x + m - 1) // m * m


def _tagcn_fused_kernel(*refs, n_layers):
    """Fused TAGCN stack: every TAGConv layer computed in one kernel invocation.

    refs layout:
      refs[0]          : (Np, Np)            bf16 normalized adjacency (resident once)
      refs[1]          : (Np, F0)            bf16 zero-padded input features
      refs[2 + 2l]     : (K+1, Fi_l, Fo_l)   bf16 per-hop weight slabs for layer l
      refs[3 + 2l]     : (1, Fo_l)           f32  bias for layer l
      refs[-1]         : (Np, C)             f32  padded output (final layer width only)
    """
    a_ref, x_ref = refs[0], refs[1]
    o_ref = refs[-1]
    wb_refs = refs[2:-1]

    a = a_ref[...]                           # (Np, Np) bf16, loaded once for all layers
    h = x_ref[...]                           # (Np, F0) bf16
    for l in range(n_layers):                # static unroll (small, fixed layer count)
        w_ref = wb_refs[2 * l]
        b_ref = wb_refs[2 * l + 1]
        # Graph propagation on the MXU: h1 = A_hat h, h2 = A_hat^2 h (f32 accumulate).
        h1 = jnp.dot(a, h, preferred_element_type=jnp.float32).astype(jnp.bfloat16)
        h2 = jnp.dot(a, h1, preferred_element_type=jnp.float32).astype(jnp.bfloat16)
        # Linear: three accumulated matmuls instead of concat([h, h1, h2]) @ W.
        out = jnp.dot(h, w_ref[0], preferred_element_type=jnp.float32)
        out += jnp.dot(h1, w_ref[1], preferred_element_type=jnp.float32)
        out += jnp.dot(h2, w_ref[2], preferred_element_type=jnp.float32)
        out += b_ref[...]                    # f32 bias add (broadcast over rows)
        if l != n_layers - 1:
            # hidden layers: f32 ReLU (v5e-friendly), cast to bf16 only for next MXU use;
            # dropout between layers is identity in eval mode.
            h = jnp.maximum(out, 0.0).astype(jnp.bfloat16)
        else:
            o_ref[...] = out


def tagcn_forward(a_hat, features, params):
    """TAGCN.forward: stacked TAGConv layers fused into one Pallas kernel."""
    n, f_in = features.shape
    n_classes = params[-1][0].shape[1]
    n_layers = len(params)

    n_pad = _round_up(n, LANE)
    f0_pad = _round_up(f_in, LANE)
    c_pad = _round_up(n_classes, LANE)

    a_p = jnp.zeros((n_pad, n_pad), jnp.bfloat16).at[:n, :n].set(
        a_hat.astype(jnp.bfloat16))
    x_p = jnp.zeros((n_pad, f0_pad), jnp.bfloat16).at[:n, :f_in].set(
        features.astype(jnp.bfloat16))

    # Per-layer padded weight slabs (no global-max padding): (K+1, Fi_pad, Fo_pad) bf16,
    # bias (1, Fo_pad) f32. Zero padding keeps padded lanes exactly zero through the stack.
    # NOTE: w.reshape(K+1, fi, fo) assumes hop-major layout of concat([h, A h, A^2 h]);
    # verify against DGL TAGConv's lin.weight layout before importing trained weights.
    layer_ws, layer_bs = [], []
    flops = 0
    fi_pad_prev = f0_pad
    for (w, b) in params:
        fi3, fo = w.shape
        fi = fi3 // (K_HOPS + 1)
        fi_pad = _round_up(fi, LANE)
        fo_pad = _round_up(fo, LANE)
        assert fi_pad == fi_pad_prev, "layer input width must match previous output"
        wp = (jnp.zeros((K_HOPS + 1, fi_pad, fo_pad), jnp.float32)
              .at[:, :fi, :fo].set(w.reshape(K_HOPS + 1, fi, fo))
              .astype(jnp.bfloat16))
        bp = jnp.zeros((1, fo_pad), jnp.float32).at[:, :fo].set(b.reshape(1, fo))
        layer_ws.append(wp)
        layer_bs.append(bp)
        flops += K_HOPS * 2 * n_pad * n_pad * fi_pad              # propagation hops
        flops += (K_HOPS + 1) * 2 * n_pad * fi_pad * fo_pad       # linear (3 hop slabs)
        fi_pad_prev = fo_pad

    operands = [a_p, x_p]
    for wp, bp in zip(layer_ws, layer_bs):
        operands += [wp, bp]

    resident_bytes = int(sum(o.size * o.dtype.itemsize for o in operands)
                         + n_pad * c_pad * 4)

    # Generation-aware scoped-VMEM budget: ~80% of physical VMEM per TensorCore
    # (v7x: ~51 MiB of 64; v5e/v6e: ~102 MiB of 128), conservative fallback otherwise.
    try:
        vmem_cap = int(pltpu.get_tpu_info().vmem_capacity_bytes)
    except Exception:
        vmem_cap = 64 << 20
    budget = int(0.8 * vmem_cap)
    vmem_limit = int(min(max(int(1.5 * resident_bytes) + (4 << 20), 32 << 20), budget))

    vmem = pltpu.MemorySpace.VMEM
    in_specs = [pl.BlockSpec(memory_space=vmem) for _ in operands]

    kernel = functools.partial(_tagcn_fused_kernel, n_layers=n_layers)
    out_p = pl.pallas_call(
        kernel,
        out_shape=jax.ShapeDtypeStruct((n_pad, c_pad), jnp.float32),
        in_specs=in_specs,
        out_specs=pl.BlockSpec(memory_space=vmem),
        compiler_params=pltpu.CompilerParams(vmem_limit_bytes=vmem_limit),
        cost_estimate=pl.CostEstimate(
            flops=flops, transcendentals=0, bytes_accessed=resident_bytes),
    )(*operands)

    # Slice the padding back off (padded lanes/rows never leak into real outputs).
    return out_p[:n, :n_classes]


def _init_params(key, in_feats, size_hidden, n_classes, n_layers):
    """Deterministic synthetic init matching TAGCN layer shapes (K=2)."""
    dims = [(in_feats, size_hidden)]
    dims += [(size_hidden, size_hidden)] * (n_layers - 1)
    dims += [(size_hidden, n_classes)]
    params = []
    for (fi, fo) in dims:
        key, kw, kb = jax.random.split(key, 3)
        scale = (2.0 / (fi * (K_HOPS + 1) + fo)) ** 0.5
        w = scale * jax.random.normal(kw, (fi * (K_HOPS + 1), fo), jnp.float32)
        b = 0.01 * jax.random.normal(kb, (1, fo), jnp.float32)
        params.append((w, b))
    return params


def _make_graph(key, n):
    """Random symmetric graph -> dense normalized adjacency (DGL in-degree norm)."""
    adj = (jax.random.uniform(key, (n, n)) < 0.3).astype(jnp.float32)
    adj = jnp.maximum(adj, adj.T)                         # symmetric
    adj = adj * (1.0 - jnp.eye(n, dtype=jnp.float32))     # no self-loops
    deg = jnp.clip(adj.sum(axis=1), 1.0, None)            # in-degree, clamp(min=1)
    dinv = deg ** -0.5
    return dinv[:, None] * adj * dinv[None, :]


if __name__ == "__main__":
    key = jax.random.PRNGKey(0)
    k_g, k_x, k_p = jax.random.split(key, 3)

    # small config: in_feats=16, hidden=32, n_classes=8, n_layers=2 -> 3 TAGConv layers
    N, IN_FEATS, HIDDEN, N_CLASSES, N_LAYERS = 32, 16, 32, 8, 2

    a_hat = _make_graph(k_g, N)                                    # (32, 32)
    features = jax.random.normal(k_x, (N, IN_FEATS), jnp.float32)  # (32, 16)
    params = _init_params(k_p, IN_FEATS, HIDDEN, N_CLASSES, N_LAYERS)

    out = tagcn_forward(a_hat, features, params)
    jax.block_until_ready(out)
    assert out.shape == (N, N_CLASSES)
    print("KERNEL_OK")
</pallas_src>

<mosaic_0001>
module attributes {stable_mosaic.version = 11 : i64} {
  func.func @_tagcn_fused_kernel(%arg0: memref<128x128xbf16, #tpu.memory_space<vmem>>, %arg1: memref<128x128xbf16, #tpu.memory_space<vmem>>, %arg2: memref<3x128x128xbf16, #tpu.memory_space<vmem>>, %arg3: memref<1x128xf32, #tpu.memory_space<vmem>>, %arg4: memref<3x128x128xbf16, #tpu.memory_space<vmem>>, %arg5: memref<1x128xf32, #tpu.memory_space<vmem>>, %arg6: memref<3x128x128xbf16, #tpu.memory_space<vmem>>, %arg7: memref<1x128xf32, #tpu.memory_space<vmem>>, %arg8: memref<128x128xf32, #tpu.memory_space<vmem>>) attributes {dimension_semantics = [], scalar_prefetch = 0 : i64, scratch_operands = 0 : i64, tpu.core_type = #tpu.core_type<tc>} {
    %c0 = arith.constant 0 : index
    %c0_0 = arith.constant 0 : index
    %0 = vector.load %arg0[%c0, %c0_0] : memref<128x128xbf16, #tpu.memory_space<vmem>>, vector<128x128xbf16>
    %c0_1 = arith.constant 0 : index
    %c0_2 = arith.constant 0 : index
    %1 = vector.load %arg1[%c0_1, %c0_2] : memref<128x128xbf16, #tpu.memory_space<vmem>>, vector<128x128xbf16>
    %cst = arith.constant dense<0.000000e+00> : vector<128x128xf32>
    %2 = tpu.matmul %0, %1, %cst {dimension_numbers = #tpu.dot_dimension_numbers<[1], [0], [0], [1], [0, 0, 1, 1], [], []>} : vector<128x128xbf16>, vector<128x128xbf16>, vector<128x128xf32> -> vector<128x128xf32>
    %3 = arith.truncf %2 : vector<128x128xf32> to vector<128x128xbf16>
    %cst_3 = arith.constant dense<0.000000e+00> : vector<128x128xf32>
    %4 = tpu.matmul %0, %3, %cst_3 {dimension_numbers = #tpu.dot_dimension_numbers<[1], [0], [0], [1], [0, 0, 1, 1], [], []>} : vector<128x128xbf16>, vector<128x128xbf16>, vector<128x128xf32> -> vector<128x128xf32>
    %5 = arith.truncf %4 : vector<128x128xf32> to vector<128x128xbf16>
    %c0_4 = arith.constant 0 : index
    %c0_5 = arith.constant 0 : index
    %c0_6 = arith.constant 0 : index
    %6 = vector.load %arg2[%c0_4, %c0_5, %c0_6] : memref<3x128x128xbf16, #tpu.memory_space<vmem>>, vector<1x128x128xbf16>
    %7 = vector.shape_cast %6 : vector<1x128x128xbf16> to vector<128x128xbf16>
    %cst_7 = arith.constant dense<0.000000e+00> : vector<128x128xf32>
    %8 = tpu.matmul %1, %7, %cst_7 {dimension_numbers = #tpu.dot_dimension_numbers<[1], [0], [0], [1], [0, 0, 1, 1], [], []>} : vector<128x128xbf16>, vector<128x128xbf16>, vector<128x128xf32> -> vector<128x128xf32>
    %c1 = arith.constant 1 : index
    %c0_8 = arith.constant 0 : index
    %c0_9 = arith.constant 0 : index
    %9 = vector.load %arg2[%c1, %c0_8, %c0_9] : memref<3x128x128xbf16, #tpu.memory_space<vmem>>, vector<1x128x128xbf16>
    %10 = vector.shape_cast %9 : vector<1x128x128xbf16> to vector<128x128xbf16>
    %cst_10 = arith.constant dense<0.000000e+00> : vector<128x128xf32>
    %11 = tpu.matmul %3, %10, %cst_10 {dimension_numbers = #tpu.dot_dimension_numbers<[1], [0], [0], [1], [0, 0, 1, 1], [], []>} : vector<128x128xbf16>, vector<128x128xbf16>, vector<128x128xf32> -> vector<128x128xf32>
    %12 = arith.addf %8, %11 : vector<128x128xf32>
    %c2 = arith.constant 2 : index
    %c0_11 = arith.constant 0 : index
    %c0_12 = arith.constant 0 : index
    %13 = vector.load %arg2[%c2, %c0_11, %c0_12] : memref<3x128x128xbf16, #tpu.memory_space<vmem>>, vector<1x128x128xbf16>
    %14 = vector.shape_cast %13 : vector<1x128x128xbf16> to vector<128x128xbf16>
    %cst_13 = arith.constant dense<0.000000e+00> : vector<128x128xf32>
    %15 = tpu.matmul %5, %14, %cst_13 {dimension_numbers = #tpu.dot_dimension_numbers<[1], [0], [0], [1], [0, 0, 1, 1], [], []>} : vector<128x128xbf16>, vector<128x128xbf16>, vector<128x128xf32> -> vector<128x128xf32>
    %16 = arith.addf %12, %15 : vector<128x128xf32>
    %c0_14 = arith.constant 0 : index
    %c0_15 = arith.constant 0 : index
    %17 = vector.load %arg3[%c0_14, %c0_15] : memref<1x128xf32, #tpu.memory_space<vmem>>, vector<1x128xf32>
    %18 = vector.broadcast %17 : vector<1x128xf32> to vector<128x128xf32>
    %19 = arith.addf %16, %18 : vector<128x128xf32>
    %cst_16 = arith.constant 0.000000e+00 : f32
    %20 = vector.broadcast %cst_16 : f32 to vector<128x128xf32>
    %21 = arith.maximumf %19, %20 : vector<128x128xf32>
    %22 = arith.truncf %21 : vector<128x128xf32> to vector<128x128xbf16>
    %cst_17 = arith.constant dense<0.000000e+00> : vector<128x128xf32>
    %23 = tpu.matmul %0, %22, %cst_17 {dimension_numbers = #tpu.dot_dimension_numbers<[1], [0], [0], [1], [0, 0, 1, 1], [], []>} : vector<128x128xbf16>, vector<128x128xbf16>, vector<128x128xf32> -> vector<128x128xf32>
    %24 = arith.truncf %23 : vector<128x128xf32> to vector<128x128xbf16>
    %cst_18 = arith.constant dense<0.000000e+00> : vector<128x128xf32>
    %25 = tpu.matmul %0, %24, %cst_18 {dimension_numbers = #tpu.dot_dimension_numbers<[1], [0], [0], [1], [0, 0, 1, 1], [], []>} : vector<128x128xbf16>, vector<128x128xbf16>, vector<128x128xf32> -> vector<128x128xf32>
    %26 = arith.truncf %25 : vector<128x128xf32> to vector<128x128xbf16>
    %c0_19 = arith.constant 0 : index
    %c0_20 = arith.constant 0 : index
    %c0_21 = arith.constant 0 : index
    %27 = vector.load %arg4[%c0_19, %c0_20, %c0_21] : memref<3x128x128xbf16, #tpu.memory_space<vmem>>, vector<1x128x128xbf16>
    %28 = vector.shape_cast %27 : vector<1x128x128xbf16> to vector<128x128xbf16>
    %cst_22 = arith.constant dense<0.000000e+00> : vector<128x128xf32>
    %29 = tpu.matmul %22, %28, %cst_22 {dimension_numbers = #tpu.dot_dimension_numbers<[1], [0], [0], [1], [0, 0, 1, 1], [], []>} : vector<128x128xbf16>, vector<128x128xbf16>, vector<128x128xf32> -> vector<128x128xf32>
    %c1_23 = arith.constant 1 : index
    %c0_24 = arith.constant 0 : index
    %c0_25 = arith.constant 0 : index
    %30 = vector.load %arg4[%c1_23, %c0_24, %c0_25] : memref<3x128x128xbf16, #tpu.memory_space<vmem>>, vector<1x128x128xbf16>
    %31 = vector.shape_cast %30 : vector<1x128x128xbf16> to vector<128x128xbf16>
    %cst_26 = arith.constant dense<0.000000e+00> : vector<128x128xf32>
    %32 = tpu.matmul %24, %31, %cst_26 {dimension_numbers = #tpu.dot_dimension_numbers<[1], [0], [0], [1], [0, 0, 1, 1], [], []>} : vector<128x128xbf16>, vector<128x128xbf16>, vector<128x128xf32> -> vector<128x128xf32>
    %33 = arith.addf %29, %32 : vector<128x128xf32>
    %c2_27 = arith.constant 2 : index
    %c0_28 = arith.constant 0 : index
    %c0_29 = arith.constant 0 : index
    %34 = vector.load %arg4[%c2_27, %c0_28, %c0_29] : memref<3x128x128xbf16, #tpu.memory_space<vmem>>, vector<1x128x128xbf16>
    %35 = vector.shape_cast %34 : vector<1x128x128xbf16> to vector<128x128xbf16>
    %cst_30 = arith.constant dense<0.000000e+00> : vector<128x128xf32>
    %36 = tpu.matmul %26, %35, %cst_30 {dimension_numbers = #tpu.dot_dimension_numbers<[1], [0], [0], [1], [0, 0, 1, 1], [], []>} : vector<128x128xbf16>, vector<128x128xbf16>, vector<128x128xf32> -> vector<128x128xf32>
    %37 = arith.addf %33, %36 : vector<128x128xf32>
    %c0_31 = arith.constant 0 : index
    %c0_32 = arith.constant 0 : index
    %38 = vector.load %arg5[%c0_31, %c0_32] : memref<1x128xf32, #tpu.memory_space<vmem>>, vector<1x128xf32>
    %39 = vector.broadcast %38 : vector<1x128xf32> to vector<128x128xf32>
    %40 = arith.addf %37, %39 : vector<128x128xf32>
    %cst_33 = arith.constant 0.000000e+00 : f32
    %41 = vector.broadcast %cst_33 : f32 to vector<128x128xf32>
    %42 = arith.maximumf %40, %41 : vector<128x128xf32>
    %43 = arith.truncf %42 : vector<128x128xf32> to vector<128x128xbf16>
    %cst_34 = arith.constant dense<0.000000e+00> : vector<128x128xf32>
    %44 = tpu.matmul %0, %43, %cst_34 {dimension_numbers = #tpu.dot_dimension_numbers<[1], [0], [0], [1], [0, 0, 1, 1], [], []>} : vector<128x128xbf16>, vector<128x128xbf16>, vector<128x128xf32> -> vector<128x128xf32>
    %45 = arith.truncf %44 : vector<128x128xf32> to vector<128x128xbf16>
    %cst_35 = arith.constant dense<0.000000e+00> : vector<128x128xf32>
    %46 = tpu.matmul %0, %45, %cst_35 {dimension_numbers = #tpu.dot_dimension_numbers<[1], [0], [0], [1], [0, 0, 1, 1], [], []>} : vector<128x128xbf16>, vector<128x128xbf16>, vector<128x128xf32> -> vector<128x128xf32>
    %47 = arith.truncf %46 : vector<128x128xf32> to vector<128x128xbf16>
    %c0_36 = arith.constant 0 : index
    %c0_37 = arith.constant 0 : index
    %c0_38 = arith.constant 0 : index
    %48 = vector.load %arg6[%c0_36, %c0_37, %c0_38] : memref<3x128x128xbf16, #tpu.memory_space<vmem>>, vector<1x128x128xbf16>
    %49 = vector.shape_cast %48 : vector<1x128x128xbf16> to vector<128x128xbf16>
    %cst_39 = arith.constant dense<0.000000e+00> : vector<128x128xf32>
    %50 = tpu.matmul %43, %49, %cst_39 {dimension_numbers = #tpu.dot_dimension_numbers<[1], [0], [0], [1], [0, 0, 1, 1], [], []>} : vector<128x128xbf16>, vector<128x128xbf16>, vector<128x128xf32> -> vector<128x128xf32>
    %c1_40 = arith.constant 1 : index
    %c0_41 = arith.constant 0 : index
    %c0_42 = arith.constant 0 : index
    %51 = vector.load %arg6[%c1_40, %c0_41, %c0_42] : memref<3x128x128xbf16, #tpu.memory_space<vmem>>, vector<1x128x128xbf16>
    %52 = vector.shape_cast %51 : vector<1x128x128xbf16> to vector<128x128xbf16>
    %cst_43 = arith.constant dense<0.000000e+00> : vector<128x128xf32>
    %53 = tpu.matmul %45, %52, %cst_43 {dimension_numbers = #tpu.dot_dimension_numbers<[1], [0], [0], [1], [0, 0, 1, 1], [], []>} : vector<128x128xbf16>, vector<128x128xbf16>, vector<128x128xf32> -> vector<128x128xf32>
    %54 = arith.addf %50, %53 : vector<128x128xf32>
    %c2_44 = arith.constant 2 : index
    %c0_45 = arith.constant 0 : index
    %c0_46 = arith.constant 0 : index
    %55 = vector.load %arg6[%c2_44, %c0_45, %c0_46] : memref<3x128x128xbf16, #tpu.memory_space<vmem>>, vector<1x128x128xbf16>
    %56 = vector.shape_cast %55 : vector<1x128x128xbf16> to vector<128x128xbf16>
    %cst_47 = arith.constant dense<0.000000e+00> : vector<128x128xf32>
    %57 = tpu.matmul %47, %56, %cst_47 {dimension_numbers = #tpu.dot_dimension_numbers<[1], [0], [0], [1], [0, 0, 1, 1], [], []>} : vector<128x128xbf16>, vector<128x128xbf16>, vector<128x128xf32> -> vector<128x128xf32>
    %58 = arith.addf %54, %57 : vector<128x128xf32>
    %c0_48 = arith.constant 0 : index
    %c0_49 = arith.constant 0 : index
    %59 = vector.load %arg7[%c0_48, %c0_49] : memref<1x128xf32, #tpu.memory_space<vmem>>, vector<1x128xf32>
    %60 = vector.broadcast %59 : vector<1x128xf32> to vector<128x128xf32>
    %61 = arith.addf %58, %60 : vector<128x128xf32>
    %c0_50 = arith.constant 0 : index
    %c0_51 = arith.constant 0 : index
    %62 = vector.load %arg8[%c0_50, %c0_51] : memref<128x128xf32, #tpu.memory_space<vmem>>, vector<128x128xf32>
    tpu.vector_store %arg8[%c0_50, %c0_51], %61 {strides = array<i32>} : memref<128x128xf32, #tpu.memory_space<vmem>>, vector<128x128xf32>,
    return
  }
}

</mosaic_0001>

<llo_original>
// kernel: tpu_custom_call.1
$region0: #{tpu_custom_call.1}
  #allocation0 [shape = 'u32[]', space=smem, size = 0x4, offset = 0x4, fixed_abs, tag = 'smem constant byte address 0x4 - core index']
  #allocation1 [shape = 'u32[144,128]{1,0:T(1,128)}', space=vmem, size = 0x12000, scoped, tag = 'internal scratch']
  %s0 = inlined_call_operand.hbm [shape: bf16[128,128], index: 0, kind: input, shape index: {}]
  %s1 = inlined_call_operand.hbm [shape: bf16[128,128], index: 1, kind: input, shape index: {}]
  %s2 = inlined_call_operand.hbm [shape: bf16[3,128,128], index: 2, kind: input, shape index: {}]
  %s3 = inlined_call_operand.vmem [shape: f32[1,128], index: 3, kind: input, shape index: {}]
  %s4 = inlined_call_operand.hbm [shape: bf16[3,128,128], index: 4, kind: input, shape index: {}]
  %s5 = inlined_call_operand.vmem [shape: f32[1,128], index: 5, kind: input, shape index: {}]
  %s6 = inlined_call_operand.hbm [shape: bf16[3,128,128], index: 6, kind: input, shape index: {}]
  %s7 = inlined_call_operand.vmem [shape: f32[1,128], index: 7, kind: input, shape index: {}]
  %s8 = inlined_call_operand.hbm [shape: f32[128,128], index: 8, kind: output, shape index: {}]
  %s9 = sld [smem:[#allocation0]]
  $region62: #{tpu_custom_call.1} parent=0
    _
  %s11 = ssub.s32 1, %s9
  %s12 = scalar_select 0, %s11, %s9
  $region1: #{tpu_custom_call.1} parent=0
    #allocation2 [shape = 'u8[32768]{0}', space=vmem, size = 0x8000, scoped, tag = 'input window, operand 0, single buffered']
    #allocation3 [shape = 's32[1]{0}', space=sflag, size = 0x4, scoped, tag = 'scoped memory for tpu_custom_call.1']
    #allocation4 [shape = 's32[1]{0}', space=sflag, size = 0x4, scoped, tag = 'scoped memory for tpu_custom_call.1']
    #allocation5 [shape = 'u8[32768]{0}', space=vmem, size = 0x8000, scoped, tag = 'input window, operand 1, single buffered']
    #allocation6 [shape = 's32[1]{0}', space=sflag, size = 0x4, scoped, tag = 'scoped memory for tpu_custom_call.1']
    #allocation7 [shape = 'u8[98304]{0}', space=vmem, size = 0x18000, scoped, tag = 'input window, operand 2, single buffered']
    #allocation8 [shape = 'u8[98304]{0}', space=vmem, size = 0x18000, scoped, tag = 'input window, operand 4, single buffered']
    #allocation9 [shape = 's32[1]{0}', space=sflag, size = 0x4, scoped, tag = 'scoped memory for tpu_custom_call.1']
    #allocation10 [shape = 'u8[98304]{0}', space=vmem, size = 0x18000, scoped, tag = 'input window, operand 6, single buffered']
    #allocation11 [shape = 'u8[65536]{0}', space=vmem, size = 0x10000, scoped, tag = 'output window, operand 0, single buffered']
    %13 = vsyncpa [#allocation3], 0
    %14 = vsyncpa [#allocation6], 0
    %15 = vsyncpa [#allocation9], 0
    %16 = vsyncpa [#allocation4], 0
    // Predicated region
    $region2: #{tpu_custom_call.1} parent=1 // pred_check
      _
    $region3: #{tpu_custom_call.1} parent=1 // pred_check_branch
      %18 = sbr.rel (0) target = $region5
    $region4: #{tpu_custom_call.1} parent=1 // pred_region
      %s20 = ssub.s32 1024, 1024
      %21 = vsyncadd [#allocation3], %s20
      %s22 = sshll.u32 [#allocation2], 4
      %s23 = int_to_ptr.vmem [resolvable:$true] %s22
      %28 = dma.hbm_to_vmem [thread:$0]  %s0, 1024, %s23, [#allocation3], 64, 64, 4
    $region5: #{tpu_custom_call.1} parent=1 // pred_fallthru
      _
    // Predicated region
    $region6: #{tpu_custom_call.1} parent=1 // pred_check
      _
    $region7: #{tpu_custom_call.1} parent=1 // pred_check_branch
      %30 = sbr.rel (0) target = $region9
    $region8: #{tpu_custom_call.1} parent=1 // pred_region
      %s32 = ssub.s32 1024, 1024
      %33 = vsyncadd [#allocation6], %s32
      %s34 = sshll.u32 [#allocation5], 4
      %s35 = int_to_ptr.vmem [resolvable:$true] %s34
      %40 = dma.hbm_to_vmem [thread:$0]  %s1, 1024, %s35, [#allocation6], 64, 64, 4
    $region9: #{tpu_custom_call.1} parent=1 // pred_fallthru
      _
    // Predicated region
    $region10: #{tpu_custom_call.1} parent=1 // pred_check
      _
    $region11: #{tpu_custom_call.1} parent=1 // pred_check_branch
      %42 = sbr.rel (0) target = $region13
    $region12: #{tpu_custom_call.1} parent=1 // pred_region
      %s44 = ssub.s32 3072, 3072
      %45 = vsyncadd [#allocation6], %s44
      %s46 = sshll.u32 [#allocation7], 4
      %s47 = int_to_ptr.vmem [resolvable:$true] %s46
      %52 = dma.hbm_to_vmem [thread:$0]  %s2, 3072, %s47, [#allocation6], 64, 64, 4
    $region13: #{tpu_custom_call.1} parent=1 // pred_fallthru
      _
    // Predicated region
    $region14: #{tpu_custom_call.1} parent=1 // pred_check
      _
    $region15: #{tpu_custom_call.1} parent=1 // pred_check_branch
      %54 = sbr.rel (0) target = $region17
    $region16: #{tpu_custom_call.1} parent=1 // pred_region
      _
    $region17: #{tpu_custom_call.1} parent=1 // pred_fallthru
      _
    // Predicated region
    $region18: #{tpu_custom_call.1} parent=1 // pred_check
      _
    $region19: #{tpu_custom_call.1} parent=1 // pred_check_branch
      %56 = sbr.rel (0) target = $region21
    $region20: #{tpu_custom_call.1} parent=1 // pred_region
      %s58 = ssub.s32 3072, 3072
      %59 = vsyncadd [#allocation9], %s58
      %s60 = sshll.u32 [#allocation8], 4
      %s61 = int_to_ptr.vmem [resolvable:$true] %s60
      %66 = dma.hbm_to_vmem [thread:$0]  %s4, 3072, %s61, [#allocation9], 64, 64, 4
    $region21: #{tpu_custom_call.1} parent=1 // pred_fallthru
      _
    // Predicated region
    $region22: #{tpu_custom_call.1} parent=1 // pred_check
      _
    $region23: #{tpu_custom_call.1} parent=1 // pred_check_branch
      %68 = sbr.rel (0) target = $region25
    $region24: #{tpu_custom_call.1} parent=1 // pred_region
      _
    $region25: #{tpu_custom_call.1} parent=1 // pred_fallthru
      _
    // Predicated region
    $region26: #{tpu_custom_call.1} parent=1 // pred_check
      _
    $region27: #{tpu_custom_call.1} parent=1 // pred_check_branch
      %70 = sbr.rel (0) target = $region29
    $region28: #{tpu_custom_call.1} parent=1 // pred_region
      %s72 = ssub.s32 3072, 3072
      %73 = vsyncadd [#allocation9], %s72
      %s74 = sshll.u32 [#allocation10], 4
      %s75 = int_to_ptr.vmem [resolvable:$true] %s74
      %80 = dma.hbm_to_vmem [thread:$0]  %s6, 3072, %s75, [#allocation9], 64, 64, 4
    $region29: #{tpu_custom_call.1} parent=1 // pred_fallthru
      _
    // Predicated region
    $region30: #{tpu_custom_call.1} parent=1 // pred_check
      _
    $region31: #{tpu_custom_call.1} parent=1 // pred_check_branch
      %82 = sbr.rel (0) target = $region33
    $region32: #{tpu_custom_call.1} parent=1 // pred_region
      _
    $region33: #{tpu_custom_call.1} parent=1 // pred_fallthru
      _
    // Predicated region
    $region34: #{tpu_custom_call.1} parent=1 // pred_check
      _
    $region35: #{tpu_custom_call.1} parent=1 // pred_check_branch
      %84 = sbr.rel (0) target = $region37
    $region36: #{tpu_custom_call.1} parent=1 // pred_region
      %85 = dma.done [#allocation3], 1024
    $region37: #{tpu_custom_call.1} parent=1 // pred_fallthru
      _
    // Predicated region
    $region38: #{tpu_custom_call.1} parent=1 // pred_check
      _
    $region39: #{tpu_custom_call.1} parent=1 // pred_check_branch
      %87 = sbr.rel (0) target = $region41
    $region40: #{tpu_custom_call.1} parent=1 // pred_region
      %88 = dma.done [#allocation6], 1024
    $region41: #{tpu_custom_call.1} parent=1 // pred_fallthru
      _
    // Predicated region
    $region42: #{tpu_custom_call.1} parent=1 // pred_check
      _
    $region43: #{tpu_custom_call.1} parent=1 // pred_check_branch
      %90 = sbr.rel (0) target = $region45
    $region44: #{tpu_custom_call.1} parent=1 // pred_region
      %91 = dma.done [#allocation6], 3072
    $region45: #{tpu_custom_call.1} parent=1 // pred_fallthru
      _
    // Predicated region
    $region46: #{tpu_custom_call.1} parent=1 // pred_check
      _
    $region47: #{tpu_custom_call.1} parent=1 // pred_check_branch
      %93 = sbr.rel (0) target = $region49
    $region48: #{tpu_custom_call.1} parent=1 // pred_region
      %94 = dma.done [#allocation9], 3072
    $region49: #{tpu_custom_call.1} parent=1 // pred_fallthru
      _
    // Predicated region
    $region50: #{tpu_custom_call.1} parent=1 // pred_check
      _
    $region51: #{tpu_custom_call.1} parent=1 // pred_check_branch
      %96 = sbr.rel (0) target = $region53
    $region52: #{tpu_custom_call.1} parent=1 // pred_region
      %97 = dma.done [#allocation9], 3072
    $region53: #{tpu_custom_call.1} parent=1 // pred_fallthru
      _
    %v99 = vld [vmem:[#allocation2] sm:$0xf]
    %v100 = vld [vmem:[#allocation2 + $0x4] sm:$0xf]
    %v101 = vld [vmem:[#allocation2 + $0x8] sm:$0xf]
    %v102 = vld [vmem:[#allocation2 + $0xc] sm:$0xf]
    %v103 = vld [vmem:[#allocation2 + $0x10] sm:$0xf]
    %v104 = vld [vmem:[#allocation2 + $0x14] sm:$0xf]
    %v105 = vld [vmem:[#allocation2 + $0x18] sm:$0xf]
    %v106 = vld [vmem:[#allocation2 + $0x1c] sm:$0xf]
    %v107 = vld [vmem:[#allocation2 + $0x20] sm:$0xf]
    %v108 = vld [vmem:[#allocation2 + $0x24] sm:$0xf]
    %v109 = vld [vmem:[#allocation2 + $0x28] sm:$0xf]
    %v110 = vld [vmem:[#allocation2 + $0x2c] sm:$0xf]
    %v111 = vld [vmem:[#allocation2 + $0x30] sm:$0xf]
    %v112 = vld [vmem:[#allocation2 + $0x34] sm:$0xf]
    %v113 = vld [vmem:[#allocation2 + $0x38] sm:$0xf]
    %v114 = vld [vmem:[#allocation2 + $0x3c] sm:$0xf]
    %v115 = vld [vmem:[#allocation5] sm:$0xf]
    %v116 = vld [vmem:[#allocation5 + $0x4] sm:$0xf]
    %v117 = vld [vmem:[#allocation5 + $0x8] sm:$0xf]
    %v118 = vld [vmem:[#allocation5 + $0xc] sm:$0xf]
    %v119 = vld [vmem:[#allocation5 + $0x10] sm:$0xf]
    %v120 = vld [vmem:[#allocation5 + $0x14] sm:$0xf]
    %v121 = vld [vmem:[#allocation5 + $0x18] sm:$0xf]
    %v122 = vld [vmem:[#allocation5 + $0x1c] sm:$0xf]
    %v123 = vld [vmem:[#allocation5 + $0x20] sm:$0xf]
    %v124 = vld [vmem:[#allocation5 + $0x24] sm:$0xf]
    %v125 = vld [vmem:[#allocation5 + $0x28] sm:$0xf]
    %v126 = vld [vmem:[#allocation5 + $0x2c] sm:$0xf]
    %v127 = vld [vmem:[#allocation5 + $0x30] sm:$0xf]
    %v128 = vld [vmem:[#allocation5 + $0x34] sm:$0xf]
    %v129 = vld [vmem:[#allocation5 + $0x38] sm:$0xf]
    %v130 = vld [vmem:[#allocation5 + $0x3c] sm:$0xf]
    %v147 = vunpack.c.l.b16 %v99
    %v148 = vunpack.c.l.b16 %v100
    %v149 = vunpack.c.l.b16 %v101
    %v150 = vunpack.c.l.b16 %v102
    %v151 = vunpack.c.l.b16 %v103
    %v152 = vunpack.c.l.b16 %v104
    %v153 = vunpack.c.l.b16 %v105
    %v154 = vunpack.c.l.b16 %v106
    %v155 = vunpack.c.l.b16 %v107
    %v156 = vunpack.c.l.b16 %v108
    %v157 = vunpack.c.l.b16 %v109
    %v158 = vunpack.c.l.b16 %v110
    %v159 = vunpack.c.l.b16 %v111
    %v160 = vunpack.c.l.b16 %v112
    %v161 = vunpack.c.l.b16 %v113
    %v162 = vunpack.c.l.b16 %v114
    %v163 = vpack.c.b16 %v148, %v147
    %v164 = vpack.c.b16 %v150, %v149
    %v165 = vpack.c.b16 %v152, %v151
    %v166 = vpack.c.b16 %v154, %v153
    %v167 = vpack.c.b16 %v156, %v155
    %v168 = vpack.c.b16 %v158, %v157
    %v169 = vpack.c.b16 %v160, %v159
    %v170 = vpack.c.b16 %v162, %v161
    %v195 = vunpack.c.l.b16 %v115
    %v196 = vunpack.c.l.b16 %v116
    %v197 = vunpack.c.l.b16 %v117
    %v198 = vunpack.c.l.b16 %v118
    %v199 = vunpack.c.l.b16 %v119
    %v200 = vunpack.c.l.b16 %v120
    %v201 = vunpack.c.l.b16 %v121
    %v202 = vunpack.c.l.b16 %v122
    %v203 = vunpack.c.l.b16 %v123
    %v204 = vunpack.c.l.b16 %v124
    %v205 = vunpack.c.l.b16 %v125
    %v206 = vunpack.c.l.b16 %v126
    %v207 = vunpack.c.l.b16 %v127
    %v208 = vunpack.c.l.b16 %v128
    %v209 = vunpack.c.l.b16 %v129
    %v210 = vunpack.c.l.b16 %v130
    %v211 = vpack.c.b16 %v196, %v195
    %v212 = vpack.c.b16 %v198, %v197
    %v213 = vpack.c.b16 %v200, %v199
    %v214 = vpack.c.b16 %v202, %v201
    %v215 = vpack.c.b16 %v204, %v203
    %v216 = vpack.c.b16 %v206, %v205
    %v217 = vpack.c.b16 %v208, %v207
    %v218 = vpack.c.b16 %v210, %v209
    %227 = vmatprep.subr.bf16.mxu0 0
    %228 = vmatpush1.bf16.msra.mxu0 %v218
    %229 = vmatprep.subr.bf16.mxu0 0
    %230 = vmatpush1.bf16.msra.mxu0 %v217
    %231 = vmatprep.subr.bf16.mxu0 0
    %232 = vmatpush1.bf16.msra.mxu0 %v216
    %233 = vmatprep.subr.bf16.mxu0 0
    %234 = vmatpush1.bf16.msra.mxu0 %v215
    %235 = vmatprep.subr.bf16.mxu0 0
    %236 = vmatpush1.bf16.msra.mxu0 %v214
    %237 = vmatprep.subr.bf16.mxu0 0
    %238 = vmatpush1.bf16.msra.mxu0 %v213
    %239 = vmatprep.subr.bf16.mxu0 0
    %240 = vmatpush1.bf16.msra.mxu0 %v212
    %241 = vmatprep.subr.bf16.mxu0 0
    %242 = vmatpush1.bf16.msra.mxu0 %v211
    %243 = vmatprep.subr.bf16.mxu0 0
    %244 = vmatpush2.bf16.msra.mxu0 0
    %245 = vmatprep.subr.bf16.mxu0 0
    %246 = vmatpush2.bf16.msra.mxu0 0
    %247 = vmatprep.subr.bf16.mxu0 0
    %248 = vmatpush2.bf16.msra.mxu0 0
    %249 = vmatprep.subr.bf16.mxu0 0
    %250 = vmatpush2.bf16.msra.mxu0 0
    %251 = vmatprep.subr.bf16.mxu0 0
    %252 = vmatpush2.bf16.msra.mxu0 0
    %253 = vmatprep.subr.bf16.mxu0 0
    %254 = vmatpush2.bf16.msra.mxu0 0
    %255 = vmatprep.subr.bf16.mxu0 0
    %256 = vmatpush2.bf16.msra.mxu0 0
    %257 = vmatprep.subr.bf16.mxu0 0
    %258 = vmatpush2.bf16.msra.mxu0 0
    %259 = vmatprep.mubr.bf16.mxu0 0
    %260 = vmatmul.mubr.bf16.gmra.mxu0 %v163
    %v261 = vpop.f32.mrf.mxu0
    %v262 = vadd.f32 0.0, %v261
    %v263 = vpop.f32.mrf.mxu0
    %v264 = vpop.f32.mrf.mxu0
    %v265 = vadd.f32 0.0, %v264
    %v266 = vpop.f32.mrf.mxu0
    %267 = vmatprep.mubr.bf16.mxu0 0
    %268 = vmatmul.mubr.bf16.gmra.mxu0 %v164
    %v269 = vpop.f32.mrf.mxu0
    %v270 = vadd.f32 0.0, %v269
    %v271 = vpop.f32.mrf.mxu0
    %v272 = vpop.f32.mrf.mxu0
    %v273 = vadd.f32 0.0, %v272
    %v274 = vpop.f32.mrf.mxu0
    %275 = vmatprep.mubr.bf16.mxu0 0
    %276 = vmatmul.mubr.bf16.gmra.mxu0 %v165
    %v277 = vpop.f32.mrf.mxu0
    %v278 = vadd.f32 0.0, %v277
    %v279 = vpop.f32.mrf.mxu0
    %v280 = vpop.f32.mrf.mxu0
    %v281 = vadd.f32 0.0, %v280
    %v282 = vpop.f32.mrf.mxu0
    %283 = vmatprep.mubr.bf16.mxu0 0
    %284 = vmatmul.mubr.bf16.gmra.mxu0 %v166
    %v285 = vpop.f32.mrf.mxu0
    %v286 = vadd.f32 0.0, %v285
    %v287 = vpop.f32.mrf.mxu0
    %v288 = vpop.f32.mrf.mxu0
    %v289 = vadd.f32 0.0, %v288
    %v290 = vpop.f32.mrf.mxu0
    %291 = vmatprep.mubr.bf16.mxu0 0
    %292 = vmatmul.mubr.bf16.gmra.mxu0 %v167
    %v293 = vpop.f32.mrf.mxu0
    %v294 = vadd.f32 0.0, %v293
    %v295 = vpop.f32.mrf.mxu0
    %v296 = vpop.f32.mrf.mxu0
    %v297 = vadd.f32 0.0, %v296
    %v298 = vpop.f32.mrf.mxu0
    %299 = vmatprep.mubr.bf16.mxu0 0
    %300 = vmatmul.mubr.bf16.gmra.mxu0 %v168
    %v301 = vpop.f32.mrf.mxu0
    %v302 = vadd.f32 0.0, %v301
    %v303 = vpop.f32.mrf.mxu0
    %v304 = vpop.f32.mrf.mxu0
    %v305 = vadd.f32 0.0, %v304
    %v306 = vpop.f32.mrf.mxu0
    %307 = vmatprep.mubr.bf16.mxu0 0
    %308 = vmatmul.mubr.bf16.gmra.mxu0 %v169
    %v309 = vpop.f32.mrf.mxu0
    %v310 = vadd.f32 0.0, %v309
    %v311 = vpop.f32.mrf.mxu0
    %v312 = vpop.f32.mrf.mxu0
    %v313 = vadd.f32 0.0, %v312
    %v314 = vpop.f32.mrf.mxu0
    %315 = vmatprep.mubr.bf16.mxu0 0
    %316 = vmatmul.mubr.bf16.gmra.mxu0 %v170
    %v317 = vpop.f32.mrf.mxu0
    %v318 = vadd.f32 0.0, %v317
    %v319 = vpop.f32.mrf.mxu0
    %v320 = vpop.f32.mrf.mxu0
    %v321 = vadd.f32 0.0, %v320
    %v322 = vpop.f32.mrf.mxu0
    %323 = vdwg.mxu0
    %v324 = vpack.c.bf16 %v265, %v262
    %v325 = vpack.c.bf16 %v273, %v270
    %v326 = vpack.c.bf16 %v281, %v278
    %v327 = vpack.c.bf16 %v289, %v286
    %v328 = vpack.c.bf16 %v297, %v294
    %v329 = vpack.c.bf16 %v305, %v302
    %v330 = vpack.c.bf16 %v313, %v310
    %v331 = vpack.c.bf16 %v321, %v318
    %332 = vmatprep.subr.bf16.mxu0 0
    %333 = vmatpush1.bf16.msra.mxu0 %v331
    %334 = vmatprep.subr.bf16.mxu0 0
    %335 = vmatpush1.bf16.msra.mxu0 %v330
    %336 = vmatprep.subr.bf16.mxu0 0
    %337 = vmatpush1.bf16.msra.mxu0 %v329
    %338 = vmatprep.subr.bf16.mxu0 0
    %339 = vmatpush1.bf16.msra.mxu0 %v328
    %340 = vmatprep.subr.bf16.mxu0 0
    %341 = vmatpush1.bf16.msra.mxu0 %v327
    %342 = vmatprep.subr.bf16.mxu0 0
    %343 = vmatpush1.bf16.msra.mxu0 %v326
    %344 = vmatprep.subr.bf16.mxu0 0
    %345 = vmatpush1.bf16.msra.mxu0 %v325
    %346 = vmatprep.subr.bf16.mxu0 0
    %347 = vmatpush1.bf16.msra.mxu0 %v324
    %348 = vmatprep.subr.bf16.mxu0 0
    %349 = vmatpush2.bf16.msra.mxu0 0
    %350 = vmatprep.subr.bf16.mxu0 0
    %351 = vmatpush2.bf16.msra.mxu0 0
    %352 = vmatprep.subr.bf16.mxu0 0
    %353 = vmatpush2.bf16.msra.mxu0 0
    %354 = vmatprep.subr.bf16.mxu0 0
    %355 = vmatpush2.bf16.msra.mxu0 0
    %356 = vmatprep.subr.bf16.mxu0 0
    %357 = vmatpush2.bf16.msra.mxu0 0
    %358 = vmatprep.subr.bf16.mxu0 0
    %359 = vmatpush2.bf16.msra.mxu0 0
    %360 = vmatprep.subr.bf16.mxu0 0
    %361 = vmatpush2.bf16.msra.mxu0 0
    %362 = vmatprep.subr.bf16.mxu0 0
    %363 = vmatpush2.bf16.msra.mxu0 0
    %364 = vmatprep.mubr.bf16.mxu0 0
    %365 = vmatmul.mubr.bf16.gmra.mxu0 %v163
    %v366 = vpop.f32.mrf.mxu0
    %v367 = vadd.f32 0.0, %v366
    %v368 = vpop.f32.mrf.mxu0
    %v369 = vpop.f32.mrf.mxu0
    %v370 = vadd.f32 0.0, %v369
    %v371 = vpop.f32.mrf.mxu0
    %372 = vmatprep.mubr.bf16.mxu0 0
    %373 = vmatmul.mubr.bf16.gmra.mxu0 %v164
    %v374 = vpop.f32.mrf.mxu0
    %v375 = vadd.f32 0.0, %v374
    %v376 = vpop.f32.mrf.mxu0
    %v377 = vpop.f32.mrf.mxu0
    %v378 = vadd.f32 0.0, %v377
    %v379 = vpop.f32.mrf.mxu0
    %380 = vmatprep.mubr.bf16.mxu0 0
    %381 = vmatmul.mubr.bf16.gmra.mxu0 %v165
    %v382 = vpop.f32.mrf.mxu0
    %v383 = vadd.f32 0.0, %v382
    %v384 = vpop.f32.mrf.mxu0
    %v385 = vpop.f32.mrf.mxu0
    %v386 = vadd.f32 0.0, %v385
    %v387 = vpop.f32.mrf.mxu0
    %388 = vmatprep.mubr.bf16.mxu0 0
    %389 = vmatmul.mubr.bf16.gmra.mxu0 %v166
    %v390 = vpop.f32.mrf.mxu0
    %v391 = vadd.f32 0.0, %v390
    %v392 = vpop.f32.mrf.mxu0
    %v393 = vpop.f32.mrf.mxu0
    %v394 = vadd.f32 0.0, %v393
    %v395 = vpop.f32.mrf.mxu0
    %396 = vmatprep.mubr.bf16.mxu0 0
    %397 = vmatmul.mubr.bf16.gmra.mxu0 %v167
    %v398 = vpop.f32.mrf.mxu0
    %v399 = vadd.f32 0.0, %v398
    %v400 = vpop.f32.mrf.mxu0
    %v401 = vpop.f32.mrf.mxu0
    %v402 = vadd.f32 0.0, %v401
    %v403 = vpop.f32.mrf.mxu0
    %404 = vmatprep.mubr.bf16.mxu0 0
    %405 = vmatmul.mubr.bf16.gmra.mxu0 %v168
    %v406 = vpop.f32.mrf.mxu0
    %v407 = vadd.f32 0.0, %v406
    %v408 = vpop.f32.mrf.mxu0
    %v409 = vpop.f32.mrf.mxu0
    %v410 = vadd.f32 0.0, %v409
    %v411 = vpop.f32.mrf.mxu0
    %412 = vmatprep.mubr.bf16.mxu0 0
    %413 = vmatmul.mubr.bf16.gmra.mxu0 %v169
    %v414 = vpop.f32.mrf.mxu0
    %v415 = vadd.f32 0.0, %v414
    %v416 = vpop.f32.mrf.mxu0
    %v417 = vpop.f32.mrf.mxu0
    %v418 = vadd.f32 0.0, %v417
    %v419 = vpop.f32.mrf.mxu0
    %420 = vmatprep.mubr.bf16.mxu0 0
    %421 = vmatmul.mubr.bf16.gmra.mxu0 %v170
    %v422 = vpop.f32.mrf.mxu0
    %v423 = vadd.f32 0.0, %v422
    %v424 = vpop.f32.mrf.mxu0
    %v425 = vpop.f32.mrf.mxu0
    %v426 = vadd.f32 0.0, %v425
    %v427 = vpop.f32.mrf.mxu0
    %428 = vdwg.mxu0
    %v429 = vpack.c.bf16 %v370, %v367
    %v430 = vpack.c.bf16 %v378, %v375
    %v431 = vpack.c.bf16 %v386, %v383
    %v432 = vpack.c.bf16 %v394, %v391
    %v433 = vpack.c.bf16 %v402, %v399
    %v434 = vpack.c.bf16 %v410, %v407
    %v435 = vpack.c.bf16 %v418, %v415
    %v436 = vpack.c.bf16 %v426, %v423
    %v437 = vld [vmem:[#allocation7] sm:$0xf]
    %v438 = vld [vmem:[#allocation7 + $0x4] sm:$0xf]
    %v439 = vld [vmem:[#allocation7 + $0x8] sm:$0xf]
    %v440 = vld [vmem:[#allocation7 + $0xc] sm:$0xf]
    %v441 = vld [vmem:[#allocation7 + $0x10] sm:$0xf]
    %v442 = vld [vmem:[#allocation7 + $0x14] sm:$0xf]
    %v443 = vld [vmem:[#allocation7 + $0x18] sm:$0xf]
    %v444 = vld [vmem:[#allocation7 + $0x1c] sm:$0xf]
    %v445 = vld [vmem:[#allocation7 + $0x20] sm:$0xf]
    %v446 = vld [vmem:[#allocation7 + $0x24] sm:$0xf]
    %v447 = vld [vmem:[#allocation7 + $0x28] sm:$0xf]
    %v448 = vld [vmem:[#allocation7 + $0x2c] sm:$0xf]
    %v449 = vld [vmem:[#allocation7 + $0x30] sm:$0xf]
    %v450 = vld [vmem:[#allocation7 + $0x34] sm:$0xf]
    %v451 = vld [vmem:[#allocation7 + $0x38] sm:$0xf]
    %v452 = vld [vmem:[#allocation7 + $0x3c] sm:$0xf]
    %s453 = scalar_lea.vmem [#allocation7], 64
    %v454 = vld [vmem:[%s453] sm:$0xf]
    %v455 = vld [vmem:[%s453 + $0x4] sm:$0xf]
    %v456 = vld [vmem:[%s453 + $0x8] sm:$0xf]
    %v457 = vld [vmem:[%s453 + $0xc] sm:$0xf]
    %v458 = vld [vmem:[%s453 + $0x10] sm:$0xf]
    %v459 = vld [vmem:[%s453 + $0x14] sm:$0xf]
    %v460 = vld [vmem:[%s453 + $0x18] sm:$0xf]
    %v461 = vld [vmem:[%s453 + $0x1c] sm:$0xf]
    %v462 = vld [vmem:[%s453 + $0x20] sm:$0xf]
    %v463 = vld [vmem:[%s453 + $0x24] sm:$0xf]
    %v464 = vld [vmem:[%s453 + $0x28] sm:$0xf]
    %v465 = vld [vmem:[%s453 + $0x2c] sm:$0xf]
    %v466 = vld [vmem:[%s453 + $0x30] sm:$0xf]
    %v467 = vld [vmem:[%s453 + $0x34] sm:$0xf]
    %v468 = vld [vmem:[%s453 + $0x38] sm:$0xf]
    %v469 = vld [vmem:[%s453 + $0x3c] sm:$0xf]
    %v486 = vunpack.c.l.b16 %v454
    %v487 = vunpack.c.l.b16 %v455
    %v488 = vunpack.c.l.b16 %v456
    %v489 = vunpack.c.l.b16 %v457
    %v490 = vunpack.c.l.b16 %v458
    %v491 = vunpack.c.l.b16 %v459
    %v492 = vunpack.c.l.b16 %v460
    %v493 = vunpack.c.l.b16 %v461
    %v494 = vunpack.c.l.b16 %v462
    %v495 = vunpack.c.l.b16 %v463
    %v496 = vunpack.c.l.b16 %v464
    %v497 = vunpack.c.l.b16 %v465
    %v498 = vunpack.c.l.b16 %v466
    %v499 = vunpack.c.l.b16 %v467
    %v500 = vunpack.c.l.b16 %v468
    %v501 = vunpack.c.l.b16 %v469
    %v502 = vpack.c.b16 %v487, %v486
    %v503 = vpack.c.b16 %v489, %v488
    %v504 = vpack.c.b16 %v491, %v490
    %v505 = vpack.c.b16 %v493, %v492
    %v506 = vpack.c.b16 %v495, %v494
    %v507 = vpack.c.b16 %v497, %v496
    %v508 = vpack.c.b16 %v499, %v498
    %v509 = vpack.c.b16 %v501, %v500
    %518 = vmatprep.subr.bf16.mxu0 0
    %519 = vmatpush1.bf16.msra.mxu0 %v509
    %520 = vmatprep.subr.bf16.mxu0 0
    %521 = vmatpush1.bf16.msra.mxu0 %v508
    %522 = vmatprep.subr.bf16.mxu0 0
    %523 = vmatpush1.bf16.msra.mxu0 %v507
    %524 = vmatprep.subr.bf16.mxu0 0
    %525 = vmatpush1.bf16.msra.mxu0 %v506
    %526 = vmatprep.subr.bf16.mxu0 0
    %527 = vmatpush1.bf16.msra.mxu0 %v505
    %528 = vmatprep.subr.bf16.mxu0 0
    %529 = vmatpush1.bf16.msra.mxu0 %v504
    %530 = vmatprep.subr.bf16.mxu0 0
    %531 = vmatpush1.bf16.msra.mxu0 %v503
    %532 = vmatprep.subr.bf16.mxu0 0
    %533 = vmatpush1.bf16.msra.mxu0 %v502
    %534 = vmatprep.subr.bf16.mxu0 0
    %535 = vmatpush2.bf16.msra.mxu0 0
    %536 = vmatprep.subr.bf16.mxu0 0
    %537 = vmatpush2.bf16.msra.mxu0 0
    %538 = vmatprep.subr.bf16.mxu0 0
    %539 = vmatpush2.bf16.msra.mxu0 0
    %540 = vmatprep.subr.bf16.mxu0 0
    %541 = vmatpush2.bf16.msra.mxu0 0
    %542 = vmatprep.subr.bf16.mxu0 0
    %543 = vmatpush2.bf16.msra.mxu0 0
    %544 = vmatprep.subr.bf16.mxu0 0
    %545 = vmatpush2.bf16.msra.mxu0 0
    %546 = vmatprep.subr.bf16.mxu0 0
    %547 = vmatpush2.bf16.msra.mxu0 0
    %548 = vmatprep.subr.bf16.mxu0 0
    %549 = vmatpush2.bf16.msra.mxu0 0
    %550 = vmatprep.mubr.bf16.mxu0 0
    %551 = vmatmul.mubr.bf16.gmra.mxu0 %v324
    %v552 = vpop.f32.mrf.mxu0
    %v553 = vadd.f32 0.0, %v552
    %v554 = vpop.f32.mrf.mxu0
    %v555 = vpop.f32.mrf.mxu0
    %v556 = vadd.f32 0.0, %v555
    %v557 = vpop.f32.mrf.mxu0
    %558 = vmatprep.mubr.bf16.mxu0 0
    %559 = vmatmul.mubr.bf16.gmra.mxu0 %v325
    %v560 = vpop.f32.mrf.mxu0
    %v561 = vadd.f32 0.0, %v560
    %v562 = vpop.f32.mrf.mxu0
    %v563 = vpop.f32.mrf.mxu0
    %v564 = vadd.f32 0.0, %v563
    %v565 = vpop.f32.mrf.mxu0
    %566 = vmatprep.mubr.bf16.mxu0 0
    %567 = vmatmul.mubr.bf16.gmra.mxu0 %v326
    %v568 = vpop.f32.mrf.mxu0
    %v569 = vadd.f32 0.0, %v568
    %v570 = vpop.f32.mrf.mxu0
    %v571 = vpop.f32.mrf.mxu0
    %v572 = vadd.f32 0.0, %v571
    %v573 = vpop.f32.mrf.mxu0
    %574 = vmatprep.mubr.bf16.mxu0 0
    %575 = vmatmul.mubr.bf16.gmra.mxu0 %v327
    %v576 = vpop.f32.mrf.mxu0
    %v577 = vadd.f32 0.0, %v576
    %v578 = vpop.f32.mrf.mxu0
    %v579 = vpop.f32.mrf.mxu0
    %v580 = vadd.f32 0.0, %v579
    %v581 = vpop.f32.mrf.mxu0
    %582 = vmatprep.mubr.bf16.mxu0 0
    %583 = vmatmul.mubr.bf16.gmra.mxu0 %v328
    %v584 = vpop.f32.mrf.mxu0
    %v585 = vadd.f32 0.0, %v584
    %v586 = vpop.f32.mrf.mxu0
    %v587 = vpop.f32.mrf.mxu0
    %v588 = vadd.f32 0.0, %v587
    %v589 = vpop.f32.mrf.mxu0
    %590 = vmatprep.mubr.bf16.mxu0 0
    %591 = vmatmul.mubr.bf16.gmra.mxu0 %v329
    %v592 = vpop.f32.mrf.mxu0
    %v593 = vadd.f32 0.0, %v592
    %v594 = vpop.f32.mrf.mxu0
    %v595 = vpop.f32.mrf.mxu0
    %v596 = vadd.f32 0.0, %v595
    %v597 = vpop.f32.mrf.mxu0
    %598 = vmatprep.mubr.bf16.mxu0 0
    %599 = vmatmul.mubr.bf16.gmra.mxu0 %v330
    %v600 = vpop.f32.mrf.mxu0
    %v601 = vadd.f32 0.0, %v600
    %v602 = vpop.f32.mrf.mxu0
    %v603 = vpop.f32.mrf.mxu0
    %v604 = vadd.f32 0.0, %v603
    %v605 = vpop.f32.mrf.mxu0
    %606 = vmatprep.mubr.bf16.mxu0 0
    %607 = vmatmul.mubr.bf16.gmra.mxu0 %v331
    %v608 = vpop.f32.mrf.mxu0
    %v609 = vadd.f32 0.0, %v608
    %v610 = vpop.f32.mrf.mxu0
    %v611 = vpop.f32.mrf.mxu0
    %v612 = vadd.f32 0.0, %v611
    %v613 = vpop.f32.mrf.mxu0
    %614 = vdwg.mxu0
    %v631 = vunpack.c.l.b16 %v437
    %v632 = vunpack.c.l.b16 %v438
    %v633 = vunpack.c.l.b16 %v439
    %v634 = vunpack.c.l.b16 %v440
    %v635 = vunpack.c.l.b16 %v441
    %v636 = vunpack.c.l.b16 %v442
    %v637 = vunpack.c.l.b16 %v443
    %v638 = vunpack.c.l.b16 %v444
    %v639 = vunpack.c.l.b16 %v445
    %v640 = vunpack.c.l.b16 %v446
    %v641 = vunpack.c.l.b16 %v447
    %v642 = vunpack.c.l.b16 %v448
    %v643 = vunpack.c.l.b16 %v449
    %v644 = vunpack.c.l.b16 %v450
    %v645 = vunpack.c.l.b16 %v451
    %v646 = vunpack.c.l.b16 %v452
    %v647 = vpack.c.b16 %v632, %v631
    %v648 = vpack.c.b16 %v634, %v633
    %v649 = vpack.c.b16 %v636, %v635
    %v650 = vpack.c.b16 %v638, %v637
    %v651 = vpack.c.b16 %v640, %v639
    %v652 = vpack.c.b16 %v642, %v641
    %v653 = vpack.c.b16 %v644, %v643
    %v654 = vpack.c.b16 %v646, %v645
    %663 = vmatprep.subr.bf16.mxu0 0
    %664 = vmatpush1.bf16.msra.mxu0 %v654
    %665 = vmatprep.subr.bf16.mxu0 0
    %666 = vmatpush1.bf16.msra.mxu0 %v653
    %667 = vmatprep.subr.bf16.mxu0 0
    %668 = vmatpush1.bf16.msra.mxu0 %v652
    %669 = vmatprep.subr.bf16.mxu0 0
    %670 = vmatpush1.bf16.msra.mxu0 %v651
    %671 = vmatprep.subr.bf16.mxu0 0
    %672 = vmatpush1.bf16.msra.mxu0 %v650
    %673 = vmatprep.subr.bf16.mxu0 0
    %674 = vmatpush1.bf16.msra.mxu0 %v649
    %675 = vmatprep.subr.bf16.mxu0 0
    %676 = vmatpush1.bf16.msra.mxu0 %v648
    %677 = vmatprep.subr.bf16.mxu0 0
    %678 = vmatpush1.bf16.msra.mxu0 %v647
    %679 = vmatprep.subr.bf16.mxu0 0
    %680 = vmatpush2.bf16.msra.mxu0 0
    %681 = vmatprep.subr.bf16.mxu0 0
    %682 = vmatpush2.bf16.msra.mxu0 0
    %683 = vmatprep.subr.bf16.mxu0 0
    %684 = vmatpush2.bf16.msra.mxu0 0
    %685 = vmatprep.subr.bf16.mxu0 0
    %686 = vmatpush2.bf16.msra.mxu0 0
    %687 = vmatprep.subr.bf16.mxu0 0
    %688 = vmatpush2.bf16.msra.mxu0 0
    %689 = vmatprep.subr.bf16.mxu0 0
    %690 = vmatpush2.bf16.msra.mxu0 0
    %691 = vmatprep.subr.bf16.mxu0 0
    %692 = vmatpush2.bf16.msra.mxu0 0
    %693 = vmatprep.subr.bf16.mxu0 0
    %694 = vmatpush2.bf16.msra.mxu0 0
    %695 = vmatprep.mubr.bf16.mxu0 0
    %696 = vmatmul.mubr.bf16.gmra.mxu0 %v211
    %v697 = vpop.f32.mrf.mxu0
    %v698 = vadd.f32 %v553, %v697
    %v699 = vpop.f32.mrf.mxu0
    %v700 = vpop.f32.mrf.mxu0
    %v701 = vadd.f32 %v556, %v700
    %v702 = vpop.f32.mrf.mxu0
    %703 = vmatprep.mubr.bf16.mxu0 0
    %704 = vmatmul.mubr.bf16.gmra.mxu0 %v212
    %v705 = vpop.f32.mrf.mxu0
    %v706 = vadd.f32 %v561, %v705
    %v707 = vpop.f32.mrf.mxu0
    %v708 = vpop.f32.mrf.mxu0
    %v709 = vadd.f32 %v564, %v708
    %v710 = vpop.f32.mrf.mxu0
    %711 = vmatprep.mubr.bf16.mxu0 0
    %712 = vmatmul.mubr.bf16.gmra.mxu0 %v213
    %v713 = vpop.f32.mrf.mxu0
    %v714 = vadd.f32 %v569, %v713
    %v715 = vpop.f32.mrf.mxu0
    %v716 = vpop.f32.mrf.mxu0
    %v717 = vadd.f32 %v572, %v716
    %v718 = vpop.f32.mrf.mxu0
    %719 = vmatprep.mubr.bf16.mxu0 0
    %720 = vmatmul.mubr.bf16.gmra.mxu0 %v214
    %v721 = vpop.f32.mrf.mxu0
    %v722 = vadd.f32 %v577, %v721
    %v723 = vpop.f32.mrf.mxu0
    %v724 = vpop.f32.mrf.mxu0
    %v725 = vadd.f32 %v580, %v724
    %v726 = vpop.f32.mrf.mxu0
    %727 = vmatprep.mubr.bf16.mxu0 0
    %728 = vmatmul.mubr.bf16.gmra.mxu0 %v215
    %v729 = vpop.f32.mrf.mxu0
    %v730 = vadd.f32 %v585, %v729
    %v731 = vpop.f32.mrf.mxu0
    %v732 = vpop.f32.mrf.mxu0
    %v733 = vadd.f32 %v588, %v732
    %v734 = vpop.f32.mrf.mxu0
    %735 = vmatprep.mubr.bf16.mxu0 0
    %736 = vmatmul.mubr.bf16.gmra.mxu0 %v216
    %v737 = vpop.f32.mrf.mxu0
    %v738 = vadd.f32 %v593, %v737
    %v739 = vpop.f32.mrf.mxu0
    %v740 = vpop.f32.mrf.mxu0
    %v741 = vadd.f32 %v596, %v740
    %v742 = vpop.f32.mrf.mxu0
    %743 = vmatprep.mubr.bf16.mxu0 0
    %744 = vmatmul.mubr.bf16.gmra.mxu0 %v217
    %v745 = vpop.f32.mrf.mxu0
    %v746 = vadd.f32 %v601, %v745
    %v747 = vpop.f32.mrf.mxu0
    %v748 = vpop.f32.mrf.mxu0
    %v749 = vadd.f32 %v604, %v748
    %v750 = vpop.f32.mrf.mxu0
    %751 = vmatprep.mubr.bf16.mxu0 0
    %752 = vmatmul.mubr.bf16.gmra.mxu0 %v218
    %v753 = vpop.f32.mrf.mxu0
    %v754 = vadd.f32 %v609, %v753
    %v755 = vpop.f32.mrf.mxu0
    %v756 = vpop.f32.mrf.mxu0
    %v757 = vadd.f32 %v612, %v756
    %v758 = vpop.f32.mrf.mxu0
    %759 = vdwg.mxu0
    %s760 = scalar_lea.vmem [#allocation7], 128
    %v761 = vld [vmem:[%s760] sm:$0xf]
    %v762 = vld [vmem:[%s760 + $0x4] sm:$0xf]
    %v763 = vld [vmem:[%s760 + $0x8] sm:$0xf]
    %v764 = vld [vmem:[%s760 + $0xc] sm:$0xf]
    %v765 = vld [vmem:[%s760 + $0x10] sm:$0xf]
    %v766 = vld [vmem:[%s760 + $0x14] sm:$0xf]
    %v767 = vld [vmem:[%s760 + $0x18] sm:$0xf]
    %v768 = vld [vmem:[%s760 + $0x1c] sm:$0xf]
    %v769 = vld [vmem:[%s760 + $0x20] sm:$0xf]
    %v770 = vld [vmem:[%s760 + $0x24] sm:$0xf]
    %v771 = vld [vmem:[%s760 + $0x28] sm:$0xf]
    %v772 = vld [vmem:[%s760 + $0x2c] sm:$0xf]
    %v773 = vld [vmem:[%s760 + $0x30] sm:$0xf]
    %v774 = vld [vmem:[%s760 + $0x34] sm:$0xf]
    %v775 = vld [vmem:[%s760 + $0x38] sm:$0xf]
    %v776 = vld [vmem:[%s760 + $0x3c] sm:$0xf]
    %v793 = vunpack.c.l.b16 %v761
    %v794 = vunpack.c.l.b16 %v762
    %v795 = vunpack.c.l.b16 %v763
    %v796 = vunpack.c.l.b16 %v764
    %v797 = vunpack.c.l.b16 %v765
    %v798 = vunpack.c.l.b16 %v766
    %v799 = vunpack.c.l.b16 %v767
    %v800 = vunpack.c.l.b16 %v768
    %v801 = vunpack.c.l.b16 %v769
    %v802 = vunpack.c.l.b16 %v770
    %v803 = vunpack.c.l.b16 %v771
    %v804 = vunpack.c.l.b16 %v772
    %v805 = vunpack.c.l.b16 %v773
    %v806 = vunpack.c.l.b16 %v774
    %v807 = vunpack.c.l.b16 %v775
    %v808 = vunpack.c.l.b16 %v776
    %v809 = vpack.c.b16 %v794, %v793
    %v810 = vpack.c.b16 %v796, %v795
    %v811 = vpack.c.b16 %v798, %v797
    %v812 = vpack.c.b16 %v800, %v799
    %v813 = vpack.c.b16 %v802, %v801
    %v814 = vpack.c.b16 %v804, %v803
    %v815 = vpack.c.b16 %v806, %v805
    %v816 = vpack.c.b16 %v808, %v807
    %825 = vmatprep.subr.bf16.mxu0 0
    %826 = vmatpush1.bf16.msra.mxu0 %v816
    %827 = vmatprep.subr.bf16.mxu0 0
    %828 = vmatpush1.bf16.msra.mxu0 %v815
    %829 = vmatprep.subr.bf16.mxu0 0
    %830 = vmatpush1.bf16.msra.mxu0 %v814
    %831 = vmatprep.subr.bf16.mxu0 0
    %832 = vmatpush1.bf16.msra.mxu0 %v813
    %833 = vmatprep.subr.bf16.mxu0 0
    %834 = vmatpush1.bf16.msra.mxu0 %v812
    %835 = vmatprep.subr.bf16.mxu0 0
    %836 = vmatpush1.bf16.msra.mxu0 %v811
    %837 = vmatprep.subr.bf16.mxu0 0
    %838 = vmatpush1.bf16.msra.mxu0 %v810
    %839 = vmatprep.subr.bf16.mxu0 0
    %840 = vmatpush1.bf16.msra.mxu0 %v809
    %841 = vmatprep.subr.bf16.mxu0 0
    %842 = vmatpush2.bf16.msra.mxu0 0
    %843 = vmatprep.subr.bf16.mxu0 0
    %844 = vmatpush2.bf16.msra.mxu0 0
    %845 = vmatprep.subr.bf16.mxu0 0
    %846 = vmatpush2.bf16.msra.mxu0 0
    %847 = vmatprep.subr.bf16.mxu0 0
    %848 = vmatpush2.bf16.msra.mxu0 0
    %849 = vmatprep.subr.bf16.mxu0 0
    %850 = vmatpush2.bf16.msra.mxu0 0
    %851 = vmatprep.subr.bf16.mxu0 0
    %852 = vmatpush2.bf16.msra.mxu0 0
    %853 = vmatprep.subr.bf16.mxu0 0
    %854 = vmatpush2.bf16.msra.mxu0 0
    %855 = vmatprep.subr.bf16.mxu0 0
    %856 = vmatpush2.bf16.msra.mxu0 0
    %857 = vmatprep.mubr.bf16.mxu0 0
    %858 = vmatmul.mubr.bf16.gmra.mxu0 %v429
    %v859 = vpop.f32.mrf.mxu0
    %v860 = vadd.f32 0.0, %v859
    %v861 = vpop.f32.mrf.mxu0
    %v862 = vpop.f32.mrf.mxu0
    %v863 = vadd.f32 0.0, %v862
    %v864 = vpop.f32.mrf.mxu0
    %865 = vmatprep.mubr.bf16.mxu0 0
    %866 = vmatmul.mubr.bf16.gmra.mxu0 %v430
    %v867 = vpop.f32.mrf.mxu0
    %v868 = vadd.f32 0.0, %v867
    %v869 = vpop.f32.mrf.mxu0
    %v870 = vpop.f32.mrf.mxu0
    %v871 = vadd.f32 0.0, %v870
    %v872 = vpop.f32.mrf.mxu0
    %873 = vmatprep.mubr.bf16.mxu0 0
    %874 = vmatmul.mubr.bf16.gmra.mxu0 %v431
    %v875 = vpop.f32.mrf.mxu0
    %v876 = vadd.f32 0.0, %v875
    %v877 = vpop.f32.mrf.mxu0
    %v878 = vpop.f32.mrf.mxu0
    %v879 = vadd.f32 0.0, %v878
    %v880 = vpop.f32.mrf.mxu0
    %881 = vmatprep.mubr.bf16.mxu0 0
    %882 = vmatmul.mubr.bf16.gmra.mxu0 %v432
    %v883 = vpop.f32.mrf.mxu0
    %v884 = vadd.f32 0.0, %v883
    %v885 = vpop.f32.mrf.mxu0
    %v886 = vpop.f32.mrf.mxu0
    %v887 = vadd.f32 0.0, %v886
    %v888 = vpop.f32.mrf.mxu0
    %889 = vmatprep.mubr.bf16.mxu0 0
    %890 = vmatmul.mubr.bf16.gmra.mxu0 %v433
    %v891 = vpop.f32.mrf.mxu0
    %v892 = vadd.f32 0.0, %v891
    %v893 = vpop.f32.mrf.mxu0
    %v894 = vpop.f32.mrf.mxu0
    %v895 = vadd.f32 0.0, %v894
    %v896 = vpop.f32.mrf.mxu0
    %897 = vmatprep.mubr.bf16.mxu0 0
    %898 = vmatmul.mubr.bf16.gmra.mxu0 %v434
    %v899 = vpop.f32.mrf.mxu0
    %v900 = vadd.f32 0.0, %v899
    %v901 = vpop.f32.mrf.mxu0
    %v902 = vpop.f32.mrf.mxu0
    %v903 = vadd.f32 0.0, %v902
    %v904 = vpop.f32.mrf.mxu0
    %905 = vmatprep.mubr.bf16.mxu0 0
    %906 = vmatmul.mubr.bf16.gmra.mxu0 %v435
    %v907 = vpop.f32.mrf.mxu0
    %v908 = vadd.f32 0.0, %v907
    %v909 = vpop.f32.mrf.mxu0
    %v910 = vpop.f32.mrf.mxu0
    %v911 = vadd.f32 0.0, %v910
    %v912 = vpop.f32.mrf.mxu0
    %913 = vmatprep.mubr.bf16.mxu0 0
    %914 = vmatmul.mubr.bf16.gmra.mxu0 %v436
    %v915 = vpop.f32.mrf.mxu0
    %v916 = vadd.f32 0.0, %v915
    %v917 = vpop.f32.mrf.mxu0
    %v918 = vpop.f32.mrf.mxu0
    %v919 = vadd.f32 0.0, %v918
    %v920 = vpop.f32.mrf.mxu0
    %921 = vdwg.mxu0
    %v922 = vadd.f32 %v698, %v860
    %v923 = vadd.f32 %v701, %v863
    %v924 = vadd.f32 %v706, %v868
    %v925 = vadd.f32 %v709, %v871
    %v926 = vadd.f32 %v714, %v876
    %v927 = vadd.f32 %v717, %v879
    %v928 = vadd.f32 %v722, %v884
    %v929 = vadd.f32 %v725, %v887
    %v930 = vadd.f32 %v730, %v892
    %v931 = vadd.f32 %v733, %v895
    %v932 = vadd.f32 %v738, %v900
    %v933 = vadd.f32 %v741, %v903
    %v934 = vadd.f32 %v746, %v908
    %v935 = vadd.f32 %v749, %v911
    %v936 = vadd.f32 %v754, %v916
    %v937 = vadd.f32 %v757, %v919
    %v938 = vld [vmem:[%s3] sm:$0x1]
    %v940 = vlaneseq
    %v941 = vshrl.u32 %v940, 7
    %v942 = vsub.s32 0, %v941
    %v943 = vrot.slane %v938, %v942
    %v945 = vadd.f32 %v922, %v943
    %v946 = vadd.f32 %v923, %v943
    %v947 = vadd.f32 %v924, %v943
    %v948 = vadd.f32 %v925, %v943
    %v949 = vadd.f32 %v926, %v943
    %v950 = vadd.f32 %v927, %v943
    %v951 = vadd.f32 %v928, %v943
    %v952 = vadd.f32 %v929, %v943
    %v953 = vadd.f32 %v930, %v943
    %v954 = vadd.f32 %v931, %v943
    %v955 = vadd.f32 %v932, %v943
    %v956 = vadd.f32 %v933, %v943
    %v957 = vadd.f32 %v934, %v943
    %v958 = vadd.f32 %v935, %v943
    %v959 = vadd.f32 %v936, %v943
    %v960 = vadd.f32 %v937, %v943
    %v961 = vmax.f32 %v945, 0.0
    %v962 = vmax.f32 %v946, 0.0
    %v963 = vmax.f32 %v947, 0.0
    %v964 = vmax.f32 %v948, 0.0
    %v965 = vmax.f32 %v949, 0.0
    %v966 = vmax.f32 %v950, 0.0
    %v967 = vmax.f32 %v951, 0.0
    %v968 = vmax.f32 %v952, 0.0
    %v969 = vmax.f32 %v953, 0.0
    %v970 = vmax.f32 %v954, 0.0
    %v971 = vmax.f32 %v955, 0.0
    %v972 = vmax.f32 %v956, 0.0
    %v973 = vmax.f32 %v957, 0.0
    %v974 = vmax.f32 %v958, 0.0
    %v975 = vmax.f32 %v959, 0.0
    %v976 = vmax.f32 %v960, 0.0
    %v977 = vpack.c.bf16 %v962, %v961
    %v978 = vpack.c.bf16 %v964, %v963
    %v979 = vpack.c.bf16 %v966, %v965
    %v980 = vpack.c.bf16 %v968, %v967
    %v981 = vpack.c.bf16 %v970, %v969
    %v982 = vpack.c.bf16 %v972, %v971
    %v983 = vpack.c.bf16 %v974, %v973
    %v984 = vpack.c.bf16 %v976, %v975
    %985 = vmatprep.subr.bf16.mxu0 0
    %986 = vmatpush1.bf16.msra.mxu0 %v984
    %987 = vmatprep.subr.bf16.mxu0 0
    %988 = vmatpush1.bf16.msra.mxu0 %v983
    %989 = vmatprep.subr.bf16.mxu0 0
    %990 = vmatpush1.bf16.msra.mxu0 %v982
    %991 = vmatprep.subr.bf16.mxu0 0
    %992 = vmatpush1.bf16.msra.mxu0 %v981
    %993 = vmatprep.subr.bf16.mxu0 0
    %994 = vmatpush1.bf16.msra.mxu0 %v980
    %995 = vmatprep.subr.bf16.mxu0 0
    %996 = vmatpush1.bf16.msra.mxu0 %v979
    %997 = vmatprep.subr.bf16.mxu0 0
    %998 = vmatpush1.bf16.msra.mxu0 %v978
    %999 = vmatprep.subr.bf16.mxu0 0
    %1000 = vmatpush1.bf16.msra.mxu0 %v977
    %1001 = vmatprep.subr.bf16.mxu0 0
    %1002 = vmatpush2.bf16.msra.mxu0 0
    %1003 = vmatprep.subr.bf16.mxu0 0
    %1004 = vmatpush2.bf16.msra.mxu0 0
    %1005 = vmatprep.subr.bf16.mxu0 0
    %1006 = vmatpush2.bf16.msra.mxu0 0
    %1007 = vmatprep.subr.bf16.mxu0 0
    %1008 = vmatpush2.bf16.msra.mxu0 0
    %1009 = vmatprep.subr.bf16.mxu0 0
    %1010 = vmatpush2.bf16.msra.mxu0 0
    %1011 = vmatprep.subr.bf16.mxu0 0
    %1012 = vmatpush2.bf16.msra.mxu0 0
    %1013 = vmatprep.subr.bf16.mxu0 0
    %1014 = vmatpush2.bf16.msra.mxu0 0
    %1015 = vmatprep.subr.bf16.mxu0 0
    %1016 = vmatpush2.bf16.msra.mxu0 0
    %1017 = vmatprep.mubr.bf16.mxu0 0
    %1018 = vmatmul.mubr.bf16.gmra.mxu0 %v163
    %v1019 = vpop.f32.mrf.mxu0
    %v1020 = vadd.f32 0.0, %v1019
    %v1021 = vpop.f32.mrf.mxu0
    %v1022 = vpop.f32.mrf.mxu0
    %v1023 = vadd.f32 0.0, %v1022
    %v1024 = vpop.f32.mrf.mxu0
    %1025 = vmatprep.mubr.bf16.mxu0 0
    %1026 = vmatmul.mubr.bf16.gmra.mxu0 %v164
    %v1027 = vpop.f32.mrf.mxu0
    %v1028 = vadd.f32 0.0, %v1027
    %v1029 = vpop.f32.mrf.mxu0
    %v1030 = vpop.f32.mrf.mxu0
    %v1031 = vadd.f32 0.0, %v1030
    %v1032 = vpop.f32.mrf.mxu0
    %1033 = vmatprep.mubr.bf16.mxu0 0
    %1034 = vmatmul.mubr.bf16.gmra.mxu0 %v165
    %v1035 = vpop.f32.mrf.mxu0
    %v1036 = vadd.f32 0.0, %v1035
    %v1037 = vpop.f32.mrf.mxu0
    %v1038 = vpop.f32.mrf.mxu0
    %v1039 = vadd.f32 0.0, %v1038
    %v1040 = vpop.f32.mrf.mxu0
    %1041 = vmatprep.mubr.bf16.mxu0 0
    %1042 = vmatmul.mubr.bf16.gmra.mxu0 %v166
    %v1043 = vpop.f32.mrf.mxu0
    %v1044 = vadd.f32 0.0, %v1043
    %v1045 = vpop.f32.mrf.mxu0
    %v1046 = vpop.f32.mrf.mxu0
    %v1047 = vadd.f32 0.0, %v1046
    %v1048 = vpop.f32.mrf.mxu0
    %1049 = vmatprep.mubr.bf16.mxu0 0
    %1050 = vmatmul.mubr.bf16.gmra.mxu0 %v167
    %v1051 = vpop.f32.mrf.mxu0
    %v1052 = vadd.f32 0.0, %v1051
    %v1053 = vpop.f32.mrf.mxu0
    %v1054 = vpop.f32.mrf.mxu0
    %v1055 = vadd.f32 0.0, %v1054
    %v1056 = vpop.f32.mrf.mxu0
    %1057 = vmatprep.mubr.bf16.mxu0 0
    %1058 = vmatmul.mubr.bf16.gmra.mxu0 %v168
    %v1059 = vpop.f32.mrf.mxu0
    %v1060 = vadd.f32 0.0, %v1059
    %v1061 = vpop.f32.mrf.mxu0
    %v1062 = vpop.f32.mrf.mxu0
    %v1063 = vadd.f32 0.0, %v1062
    %v1064 = vpop.f32.mrf.mxu0
    %1065 = vmatprep.mubr.bf16.mxu0 0
    %1066 = vmatmul.mubr.bf16.gmra.mxu0 %v169
    %v1067 = vpop.f32.mrf.mxu0
    %v1068 = vadd.f32 0.0, %v1067
    %v1069 = vpop.f32.mrf.mxu0
    %v1070 = vpop.f32.mrf.mxu0
    %v1071 = vadd.f32 0.0, %v1070
    %v1072 = vpop.f32.mrf.mxu0
    %1073 = vmatprep.mubr.bf16.mxu0 0
    %1074 = vmatmul.mubr.bf16.gmra.mxu0 %v170
    %v1075 = vpop.f32.mrf.mxu0
    %v1076 = vadd.f32 0.0, %v1075
    %v1077 = vpop.f32.mrf.mxu0
    %v1078 = vpop.f32.mrf.mxu0
    %v1079 = vadd.f32 0.0, %v1078
    %v1080 = vpop.f32.mrf.mxu0
    %1081 = vdwg.mxu0
    %v1082 = vpack.c.bf16 %v1023, %v1020
    %v1083 = vpack.c.bf16 %v1031, %v1028
    %v1084 = vpack.c.bf16 %v1039, %v1036
    %v1085 = vpack.c.bf16 %v1047, %v1044
    %v1086 = vpack.c.bf16 %v1055, %v1052
    %v1087 = vpack.c.bf16 %v1063, %v1060
    %v1088 = vpack.c.bf16 %v1071, %v1068
    %v1089 = vpack.c.bf16 %v1079, %v1076
    %1090 = vmatprep.subr.bf16.mxu0 0
    %1091 = vmatpush1.bf16.msra.mxu0 %v1089
    %1092 = vmatprep.subr.bf16.mxu0 0
    %1093 = vmatpush1.bf16.msra.mxu0 %v1088
    %1094 = vmatprep.subr.bf16.mxu0 0
    %1095 = vmatpush1.bf16.msra.mxu0 %v1087
    %1096 = vmatprep.subr.bf16.mxu0 0
    %1097 = vmatpush1.bf16.msra.mxu0 %v1086
    %1098 = vmatprep.subr.bf16.mxu0 0
    %1099 = vmatpush1.bf16.msra.mxu0 %v1085
    %1100 = vmatprep.subr.bf16.mxu0 0
    %1101 = vmatpush1.bf16.msra.mxu0 %v1084
    %1102 = vmatprep.subr.bf16.mxu0 0
    %1103 = vmatpush1.bf16.msra.mxu0 %v1083
    %1104 = vmatprep.subr.bf16.mxu0 0
    %1105 = vmatpush1.bf16.msra.mxu0 %v1082
    %1106 = vmatprep.subr.bf16.mxu0 0
    %1107 = vmatpush2.bf16.msra.mxu0 0
    %1108 = vmatprep.subr.bf16.mxu0 0
    %1109 = vmatpush2.bf16.msra.mxu0 0
    %1110 = vmatprep.subr.bf16.mxu0 0
    %1111 = vmatpush2.bf16.msra.mxu0 0
    %1112 = vmatprep.subr.bf16.mxu0 0
    %1113 = vmatpush2.bf16.msra.mxu0 0
    %1114 = vmatprep.subr.bf16.mxu0 0
    %1115 = vmatpush2.bf16.msra.mxu0 0
    %1116 = vmatprep.subr.bf16.mxu0 0
    %1117 = vmatpush2.bf16.msra.mxu0 0
    %1118 = vmatprep.subr.bf16.mxu0 0
    %1119 = vmatpush2.bf16.msra.mxu0 0
    %1120 = vmatprep.subr.bf16.mxu0 0
    %1121 = vmatpush2.bf16.msra.mxu0 0
    %1122 = vmatprep.mubr.bf16.mxu0 0
    %1123 = vmatmul.mubr.bf16.gmra.mxu0 %v163
    %v1124 = vpop.f32.mrf.mxu0
    %v1125 = vadd.f32 0.0, %v1124
    %v1126 = vpop.f32.mrf.mxu0
    %v1127 = vpop.f32.mrf.mxu0
    %v1128 = vadd.f32 0.0, %v1127
    %v1129 = vpop.f32.mrf.mxu0
    %1130 = vmatprep.mubr.bf16.mxu0 0
    %1131 = vmatmul.mubr.bf16.gmra.mxu0 %v164
    %v1132 = vpop.f32.mrf.mxu0
    %v1133 = vadd.f32 0.0, %v1132
    %v1134 = vpop.f32.mrf.mxu0
    %v1135 = vpop.f32.mrf.mxu0
    %v1136 = vadd.f32 0.0, %v1135
    %v1137 = vpop.f32.mrf.mxu0
    %1138 = vmatprep.mubr.bf16.mxu0 0
    %1139 = vmatmul.mubr.bf16.gmra.mxu0 %v165
    %v1140 = vpop.f32.mrf.mxu0
    %v1141 = vadd.f32 0.0, %v1140
    %v1142 = vpop.f32.mrf.mxu0
    %v1143 = vpop.f32.mrf.mxu0
    %v1144 = vadd.f32 0.0, %v1143
    %v1145 = vpop.f32.mrf.mxu0
    %1146 = vmatprep.mubr.bf16.mxu0 0
    %1147 = vmatmul.mubr.bf16.gmra.mxu0 %v166
    %v1148 = vpop.f32.mrf.mxu0
    %v1149 = vadd.f32 0.0, %v1148
    %v1150 = vpop.f32.mrf.mxu0
    %v1151 = vpop.f32.mrf.mxu0
    %v1152 = vadd.f32 0.0, %v1151
    %v1153 = vpop.f32.mrf.mxu0
    %1154 = vmatprep.mubr.bf16.mxu0 0
    %1155 = vmatmul.mubr.bf16.gmra.mxu0 %v167
    %v1156 = vpop.f32.mrf.mxu0
    %v1157 = vadd.f32 0.0, %v1156
    %v1158 = vpop.f32.mrf.mxu0
    %v1159 = vpop.f32.mrf.mxu0
    %v1160 = vadd.f32 0.0, %v1159
    %v1161 = vpop.f32.mrf.mxu0
    %1162 = vmatprep.mubr.bf16.mxu0 0
    %1163 = vmatmul.mubr.bf16.gmra.mxu0 %v168
    %v1164 = vpop.f32.mrf.mxu0
    %v1165 = vadd.f32 0.0, %v1164
    %v1166 = vpop.f32.mrf.mxu0
    %v1167 = vpop.f32.mrf.mxu0
    %v1168 = vadd.f32 0.0, %v1167
    %v1169 = vpop.f32.mrf.mxu0
    %1170 = vmatprep.mubr.bf16.mxu0 0
    %1171 = vmatmul.mubr.bf16.gmra.mxu0 %v169
    %v1172 = vpop.f32.mrf.mxu0
    %v1173 = vadd.f32 0.0, %v1172
    %v1174 = vpop.f32.mrf.mxu0
    %v1175 = vpop.f32.mrf.mxu0
    %v1176 = vadd.f32 0.0, %v1175
    %v1177 = vpop.f32.mrf.mxu0
    %1178 = vmatprep.mubr.bf16.mxu0 0
    %1179 = vmatmul.mubr.bf16.gmra.mxu0 %v170
    %v1180 = vpop.f32.mrf.mxu0
    %v1181 = vadd.f32 0.0, %v1180
    %v1182 = vpop.f32.mrf.mxu0
    %v1183 = vpop.f32.mrf.mxu0
    %v1184 = vadd.f32 0.0, %v1183
    %v1185 = vpop.f32.mrf.mxu0
    %1186 = vdwg.mxu0
    %v1187 = vpack.c.bf16 %v1128, %v1125
    %v1188 = vpack.c.bf16 %v1136, %v1133
    %v1189 = vpack.c.bf16 %v1144, %v1141
    %v1190 = vpack.c.bf16 %v1152, %v1149
    %v1191 = vpack.c.bf16 %v1160, %v1157
    %v1192 = vpack.c.bf16 %v1168, %v1165
    %v1193 = vpack.c.bf16 %v1176, %v1173
    %v1194 = vpack.c.bf16 %v1184, %v1181
    %v1195 = vld [vmem:[#allocation8] sm:$0xf]
    %v1196 = vld [vmem:[#allocation8 + $0x4] sm:$0xf]
    %v1197 = vld [vmem:[#allocation8 + $0x8] sm:$0xf]
    %v1198 = vld [vmem:[#allocation8 + $0xc] sm:$0xf]
    %v1199 = vld [vmem:[#allocation8 + $0x10] sm:$0xf]
    %v1200 = vld [vmem:[#allocation8 + $0x14] sm:$0xf]
    %v1201 = vld [vmem:[#allocation8 + $0x18] sm:$0xf]
    %v1202 = vld [vmem:[#allocation8 + $0x1c] sm:$0xf]
    %v1203 = vld [vmem:[#allocation8 + $0x20] sm:$0xf]
    %v1204 = vld [vmem:[#allocation8 + $0x24] sm:$0xf]
    %v1205 = vld [vmem:[#allocation8 + $0x28] sm:$0xf]
    %v1206 = vld [vmem:[#allocation8 + $0x2c] sm:$0xf]
    %v1207 = vld [vmem:[#allocation8 + $0x30] sm:$0xf]
    %v1208 = vld [vmem:[#allocation8 + $0x34] sm:$0xf]
    %v1209 = vld [vmem:[#allocation8 + $0x38] sm:$0xf]
    %v1210 = vld [vmem:[#allocation8 + $0x3c] sm:$0xf]
    %s1211 = scalar_lea.vmem [#allocation8], 64
    %v1212 = vld [vmem:[%s1211] sm:$0xf]
    %v1213 = vld [vmem:[%s1211 + $0x4] sm:$0xf]
    %v1214 = vld [vmem:[%s1211 + $0x8] sm:$0xf]
    %v1215 = vld [vmem:[%s1211 + $0xc] sm:$0xf]
    %v1216 = vld [vmem:[%s1211 + $0x10] sm:$0xf]
    %v1217 = vld [vmem:[%s1211 + $0x14] sm:$0xf]
    %v1218 = vld [vmem:[%s1211 + $0x18] sm:$0xf]
    %v1219 = vld [vmem:[%s1211 + $0x1c] sm:$0xf]
    %v1220 = vld [vmem:[%s1211 + $0x20] sm:$0xf]
    %v1221 = vld [vmem:[%s1211 + $0x24] sm:$0xf]
    %v1222 = vld [vmem:[%s1211 + $0x28] sm:$0xf]
    %v1223 = vld [vmem:[%s1211 + $0x2c] sm:$0xf]
    %v1224 = vld [vmem:[%s1211 + $0x30] sm:$0xf]
    %v1225 = vld [vmem:[%s1211 + $0x34] sm:$0xf]
    %v1226 = vld [vmem:[%s1211 + $0x38] sm:$0xf]
    %v1227 = vld [vmem:[%s1211 + $0x3c] sm:$0xf]
    %v1244 = vunpack.c.l.b16 %v1212
    %v1245 = vunpack.c.l.b16 %v1213
    %v1246 = vunpack.c.l.b16 %v1214
    %v1247 = vunpack.c.l.b16 %v1215
    %v1248 = vunpack.c.l.b16 %v1216
    %v1249 = vunpack.c.l.b16 %v1217
    %v1250 = vunpack.c.l.b16 %v1218
    %v1251 = vunpack.c.l.b16 %v1219
    %v1252 = vunpack.c.l.b16 %v1220
    %v1253 = vunpack.c.l.b16 %v1221
    %v1254 = vunpack.c.l.b16 %v1222
    %v1255 = vunpack.c.l.b16 %v1223
    %v1256 = vunpack.c.l.b16 %v1224
    %v1257 = vunpack.c.l.b16 %v1225
    %v1258 = vunpack.c.l.b16 %v1226
    %v1259 = vunpack.c.l.b16 %v1227
    %v1260 = vpack.c.b16 %v1245, %v1244
    %v1261 = vpack.c.b16 %v1247, %v1246
    %v1262 = vpack.c.b16 %v1249, %v1248
    %v1263 = vpack.c.b16 %v1251, %v1250
    %v1264 = vpack.c.b16 %v1253, %v1252
    %v1265 = vpack.c.b16 %v1255, %v1254
    %v1266 = vpack.c.b16 %v1257, %v1256
    %v1267 = vpack.c.b16 %v1259, %v1258
    %1276 = vmatprep.subr.bf16.mxu0 0
    %1277 = vmatpush1.bf16.msra.mxu0 %v1267
    %1278 = vmatprep.subr.bf16.mxu0 0
    %1279 = vmatpush1.bf16.msra.mxu0 %v1266
    %1280 = vmatprep.subr.bf16.mxu0 0
    %1281 = vmatpush1.bf16.msra.mxu0 %v1265
    %1282 = vmatprep.subr.bf16.mxu0 0
    %1283 = vmatpush1.bf16.msra.mxu0 %v1264
    %1284 = vmatprep.subr.bf16.mxu0 0
    %1285 = vmatpush1.bf16.msra.mxu0 %v1263
    %1286 = vmatprep.subr.bf16.mxu0 0
    %1287 = vmatpush1.bf16.msra.mxu0 %v1262
    %1288 = vmatprep.subr.bf16.mxu0 0
    %1289 = vmatpush1.bf16.msra.mxu0 %v1261
    %1290 = vmatprep.subr.bf16.mxu0 0
    %1291 = vmatpush1.bf16.msra.mxu0 %v1260
    %1292 = vmatprep.subr.bf16.mxu0 0
    %1293 = vmatpush2.bf16.msra.mxu0 0
    %1294 = vmatprep.subr.bf16.mxu0 0
    %1295 = vmatpush2.bf16.msra.mxu0 0
    %1296 = vmatprep.subr.bf16.mxu0 0
    %1297 = vmatpush2.bf16.msra.mxu0 0
    %1298 = vmatprep.subr.bf16.mxu0 0
    %1299 = vmatpush2.bf16.msra.mxu0 0
    %1300 = vmatprep.subr.bf16.mxu0 0
    %1301 = vmatpush2.bf16.msra.mxu0 0
    %1302 = vmatprep.subr.bf16.mxu0 0
    %1303 = vmatpush2.bf16.msra.mxu0 0
    %1304 = vmatprep.subr.bf16.mxu0 0
    %1305 = vmatpush2.bf16.msra.mxu0 0
    %1306 = vmatprep.subr.bf16.mxu0 0
    %1307 = vmatpush2.bf16.msra.mxu0 0
    %1308 = vmatprep.mubr.bf16.mxu0 0
    %1309 = vmatmul.mubr.bf16.gmra.mxu0 %v1082
    %v1310 = vpop.f32.mrf.mxu0
    %v1311 = vadd.f32 0.0, %v1310
    %v1312 = vpop.f32.mrf.mxu0
    %v1313 = vpop.f32.mrf.mxu0
    %v1314 = vadd.f32 0.0, %v1313
    %v1315 = vpop.f32.mrf.mxu0
    %1316 = vmatprep.mubr.bf16.mxu0 0
    %1317 = vmatmul.mubr.bf16.gmra.mxu0 %v1083
    %v1318 = vpop.f32.mrf.mxu0
    %v1319 = vadd.f32 0.0, %v1318
    %v1320 = vpop.f32.mrf.mxu0
    %v1321 = vpop.f32.mrf.mxu0
    %v1322 = vadd.f32 0.0, %v1321
    %v1323 = vpop.f32.mrf.mxu0
    %1324 = vmatprep.mubr.bf16.mxu0 0
    %1325 = vmatmul.mubr.bf16.gmra.mxu0 %v1084
    %v1326 = vpop.f32.mrf.mxu0
    %v1327 = vadd.f32 0.0, %v1326
    %v1328 = vpop.f32.mrf.mxu0
    %v1329 = vpop.f32.mrf.mxu0
    %v1330 = vadd.f32 0.0, %v1329
    %v1331 = vpop.f32.mrf.mxu0
    %1332 = vmatprep.mubr.bf16.mxu0 0
    %1333 = vmatmul.mubr.bf16.gmra.mxu0 %v1085
    %v1334 = vpop.f32.mrf.mxu0
    %v1335 = vadd.f32 0.0, %v1334
    %v1336 = vpop.f32.mrf.mxu0
    %v1337 = vpop.f32.mrf.mxu0
    %v1338 = vadd.f32 0.0, %v1337
    %v1339 = vpop.f32.mrf.mxu0
    %1340 = vmatprep.mubr.bf16.mxu0 0
    %1341 = vmatmul.mubr.bf16.gmra.mxu0 %v1086
    %v1342 = vpop.f32.mrf.mxu0
    %v1343 = vadd.f32 0.0, %v1342
    %v1344 = vpop.f32.mrf.mxu0
    %v1345 = vpop.f32.mrf.mxu0
    %v1346 = vadd.f32 0.0, %v1345
    %v1347 = vpop.f32.mrf.mxu0
    %1348 = vmatprep.mubr.bf16.mxu0 0
    %1349 = vmatmul.mubr.bf16.gmra.mxu0 %v1087
    %v1350 = vpop.f32.mrf.mxu0
    %v1351 = vadd.f32 0.0, %v1350
    %v1352 = vpop.f32.mrf.mxu0
    %v1353 = vpop.f32.mrf.mxu0
    %v1354 = vadd.f32 0.0, %v1353
    %v1355 = vpop.f32.mrf.mxu0
    %1356 = vmatprep.mubr.bf16.mxu0 0
    %1357 = vmatmul.mubr.bf16.gmra.mxu0 %v1088
    %v1358 = vpop.f32.mrf.mxu0
    %v1359 = vadd.f32 0.0, %v1358
    %v1360 = vpop.f32.mrf.mxu0
    %v1361 = vpop.f32.mrf.mxu0
    %v1362 = vadd.f32 0.0, %v1361
    %v1363 = vpop.f32.mrf.mxu0
    %1364 = vmatprep.mubr.bf16.mxu0 0
    %1365 = vmatmul.mubr.bf16.gmra.mxu0 %v1089
    %v1366 = vpop.f32.mrf.mxu0
    %v1367 = vadd.f32 0.0, %v1366
    %v1368 = vpop.f32.mrf.mxu0
    %v1369 = vpop.f32.mrf.mxu0
    %v1370 = vadd.f32 0.0, %v1369
    %v1371 = vpop.f32.mrf.mxu0
    %1372 = vdwg.mxu0
    %v1389 = vunpack.c.l.b16 %v1195
    %v1390 = vunpack.c.l.b16 %v1196
    %v1391 = vunpack.c.l.b16 %v1197
    %v1392 = vunpack.c.l.b16 %v1198
    %v1393 = vunpack.c.l.b16 %v1199
    %v1394 = vunpack.c.l.b16 %v1200
    %v1395 = vunpack.c.l.b16 %v1201
    %v1396 = vunpack.c.l.b16 %v1202
    %v1397 = vunpack.c.l.b16 %v1203
    %v1398 = vunpack.c.l.b16 %v1204
    %v1399 = vunpack.c.l.b16 %v1205
    %v1400 = vunpack.c.l.b16 %v1206
    %v1401 = vunpack.c.l.b16 %v1207
    %v1402 = vunpack.c.l.b16 %v1208
    %v1403 = vunpack.c.l.b16 %v1209
    %v1404 = vunpack.c.l.b16 %v1210
    %v1405 = vpack.c.b16 %v1390, %v1389
    %v1406 = vpack.c.b16 %v1392, %v1391
    %v1407 = vpack.c.b16 %v1394, %v1393
    %v1408 = vpack.c.b16 %v1396, %v1395
    %v1409 = vpack.c.b16 %v1398, %v1397
    %v1410 = vpack.c.b16 %v1400, %v1399
    %v1411 = vpack.c.b16 %v1402, %v1401
    %v1412 = vpack.c.b16 %v1404, %v1403
    %1421 = vmatprep.subr.bf16.mxu0 0
    %1422 = vmatpush1.bf16.msra.mxu0 %v1412
    %1423 = vmatprep.subr.bf16.mxu0 0
    %1424 = vmatpush1.bf16.msra.mxu0 %v1411
    %1425 = vmatprep.subr.bf16.mxu0 0
    %1426 = vmatpush1.bf16.msra.mxu0 %v1410
    %1427 = vmatprep.subr.bf16.mxu0 0
    %1428 = vmatpush1.bf16.msra.mxu0 %v1409
    %1429 = vmatprep.subr.bf16.mxu0 0
    %1430 = vmatpush1.bf16.msra.mxu0 %v1408
    %1431 = vmatprep.subr.bf16.mxu0 0
    %1432 = vmatpush1.bf16.msra.mxu0 %v1407
    %1433 = vmatprep.subr.bf16.mxu0 0
    %1434 = vmatpush1.bf16.msra.mxu0 %v1406
    %1435 = vmatprep.subr.bf16.mxu0 0
    %1436 = vmatpush1.bf16.msra.mxu0 %v1405
    %1437 = vmatprep.subr.bf16.mxu0 0
    %1438 = vmatpush2.bf16.msra.mxu0 0
    %1439 = vmatprep.subr.bf16.mxu0 0
    %1440 = vmatpush2.bf16.msra.mxu0 0
    %1441 = vmatprep.subr.bf16.mxu0 0
    %1442 = vmatpush2.bf16.msra.mxu0 0
    %1443 = vmatprep.subr.bf16.mxu0 0
    %1444 = vmatpush2.bf16.msra.mxu0 0
    %1445 = vmatprep.subr.bf16.mxu0 0
    %1446 = vmatpush2.bf16.msra.mxu0 0
    %1447 = vmatprep.subr.bf16.mxu0 0
    %1448 = vmatpush2.bf16.msra.mxu0 0
    %1449 = vmatprep.subr.bf16.mxu0 0
    %1450 = vmatpush2.bf16.msra.mxu0 0
    %1451 = vmatprep.subr.bf16.mxu0 0
    %1452 = vmatpush2.bf16.msra.mxu0 0
    %1453 = vmatprep.mubr.bf16.mxu0 0
    %1454 = vmatmul.mubr.bf16.gmra.mxu0 %v977
    %v1455 = vpop.f32.mrf.mxu0
    %v1456 = vadd.f32 %v1311, %v1455
    %v1457 = vpop.f32.mrf.mxu0
    %v1458 = vpop.f32.mrf.mxu0
    %v1459 = vadd.f32 %v1314, %v1458
    %v1460 = vpop.f32.mrf.mxu0
    %1461 = vmatprep.mubr.bf16.mxu0 0
    %1462 = vmatmul.mubr.bf16.gmra.mxu0 %v978
    %v1463 = vpop.f32.mrf.mxu0
    %v1464 = vadd.f32 %v1319, %v1463
    %v1465 = vpop.f32.mrf.mxu0
    %v1466 = vpop.f32.mrf.mxu0
    %v1467 = vadd.f32 %v1322, %v1466
    %v1468 = vpop.f32.mrf.mxu0
    %1469 = vmatprep.mubr.bf16.mxu0 0
    %1470 = vmatmul.mubr.bf16.gmra.mxu0 %v979
    %v1471 = vpop.f32.mrf.mxu0
    %v1472 = vadd.f32 %v1327, %v1471
    %v1473 = vpop.f32.mrf.mxu0
    %v1474 = vpop.f32.mrf.mxu0
    %v1475 = vadd.f32 %v1330, %v1474
    %v1476 = vpop.f32.mrf.mxu0
    %1477 = vmatprep.mubr.bf16.mxu0 0
    %1478 = vmatmul.mubr.bf16.gmra.mxu0 %v980
    %v1479 = vpop.f32.mrf.mxu0
    %v1480 = vadd.f32 %v1335, %v1479
    %v1481 = vpop.f32.mrf.mxu0
    %v1482 = vpop.f32.mrf.mxu0
    %v1483 = vadd.f32 %v1338, %v1482
    %v1484 = vpop.f32.mrf.mxu0
    %1485 = vmatprep.mubr.bf16.mxu0 0
    %1486 = vmatmul.mubr.bf16.gmra.mxu0 %v981
    %v1487 = vpop.f32.mrf.mxu0
    %v1488 = vadd.f32 %v1343, %v1487
    %v1489 = vpop.f32.mrf.mxu0
    %v1490 = vpop.f32.mrf.mxu0
    %v1491 = vadd.f32 %v1346, %v1490
    %v1492 = vpop.f32.mrf.mxu0
    %1493 = vmatprep.mubr.bf16.mxu0 0
    %1494 = vmatmul.mubr.bf16.gmra.mxu0 %v982
    %v1495 = vpop.f32.mrf.mxu0
    %v1496 = vadd.f32 %v1351, %v1495
    %v1497 = vpop.f32.mrf.mxu0
    %v1498 = vpop.f32.mrf.mxu0
    %v1499 = vadd.f32 %v1354, %v1498
    %v1500 = vpop.f32.mrf.mxu0
    %1501 = vmatprep.mubr.bf16.mxu0 0
    %1502 = vmatmul.mubr.bf16.gmra.mxu0 %v983
    %v1503 = vpop.f32.mrf.mxu0
    %v1504 = vadd.f32 %v1359, %v1503
    %v1505 = vpop.f32.mrf.mxu0
    %v1506 = vpop.f32.mrf.mxu0
    %v1507 = vadd.f32 %v1362, %v1506
    %v1508 = vpop.f32.mrf.mxu0
    %1509 = vmatprep.mubr.bf16.mxu0 0
    %1510 = vmatmul.mubr.bf16.gmra.mxu0 %v984
    %v1511 = vpop.f32.mrf.mxu0
    %v1512 = vadd.f32 %v1367, %v1511
    %v1513 = vpop.f32.mrf.mxu0
    %v1514 = vpop.f32.mrf.mxu0
    %v1515 = vadd.f32 %v1370, %v1514
    %v1516 = vpop.f32.mrf.mxu0
    %1517 = vdwg.mxu0
    %s1518 = scalar_lea.vmem [#allocation8], 128
    %v1519 = vld [vmem:[%s1518] sm:$0xf]
    %v1520 = vld [vmem:[%s1518 + $0x4] sm:$0xf]
    %v1521 = vld [vmem:[%s1518 + $0x8] sm:$0xf]
    %v1522 = vld [vmem:[%s1518 + $0xc] sm:$0xf]
    %v1523 = vld [vmem:[%s1518 + $0x10] sm:$0xf]
    %v1524 = vld [vmem:[%s1518 + $0x14] sm:$0xf]
    %v1525 = vld [vmem:[%s1518 + $0x18] sm:$0xf]
    %v1526 = vld [vmem:[%s1518 + $0x1c] sm:$0xf]
    %v1527 = vld [vmem:[%s1518 + $0x20] sm:$0xf]
    %v1528 = vld [vmem:[%s1518 + $0x24] sm:$0xf]
    %v1529 = vld [vmem:[%s1518 + $0x28] sm:$0xf]
    %v1530 = vld [vmem:[%s1518 + $0x2c] sm:$0xf]
    %v1531 = vld [vmem:[%s1518 + $0x30] sm:$0xf]
    %v1532 = vld [vmem:[%s1518 + $0x34] sm:$0xf]
    %v1533 = vld [vmem:[%s1518 + $0x38] sm:$0xf]
    %v1534 = vld [vmem:[%s1518 + $0x3c] sm:$0xf]
    %v1551 = vunpack.c.l.b16 %v1519
    %v1552 = vunpack.c.l.b16 %v1520
    %v1553 = vunpack.c.l.b16 %v1521
    %v1554 = vunpack.c.l.b16 %v1522
    %v1555 = vunpack.c.l.b16 %v1523
    %v1556 = vunpack.c.l.b16 %v1524
    %v1557 = vunpack.c.l.b16 %v1525
    %v1558 = vunpack.c.l.b16 %v1526
    %v1559 = vunpack.c.l.b16 %v1527
    %v1560 = vunpack.c.l.b16 %v1528
    %v1561 = vunpack.c.l.b16 %v1529
    %v1562 = vunpack.c.l.b16 %v1530
    %v1563 = vunpack.c.l.b16 %v1531
    %v1564 = vunpack.c.l.b16 %v1532
    %v1565 = vunpack.c.l.b16 %v1533
    %v1566 = vunpack.c.l.b16 %v1534
    %v1567 = vpack.c.b16 %v1552, %v1551
    %v1568 = vpack.c.b16 %v1554, %v1553
    %v1569 = vpack.c.b16 %v1556, %v1555
    %v1570 = vpack.c.b16 %v1558, %v1557
    %v1571 = vpack.c.b16 %v1560, %v1559
    %v1572 = vpack.c.b16 %v1562, %v1561
    %v1573 = vpack.c.b16 %v1564, %v1563
    %v1574 = vpack.c.b16 %v1566, %v1565
    %1583 = vmatprep.subr.bf16.mxu0 0
    %1584 = vmatpush1.bf16.msra.mxu0 %v1574
    %1585 = vmatprep.subr.bf16.mxu0 0
    %1586 = vmatpush1.bf16.msra.mxu0 %v1573
    %1587 = vmatprep.subr.bf16.mxu0 0
    %1588 = vmatpush1.bf16.msra.mxu0 %v1572
    %1589 = vmatprep.subr.bf16.mxu0 0
    %1590 = vmatpush1.bf16.msra.mxu0 %v1571
    %1591 = vmatprep.subr.bf16.mxu0 0
    %1592 = vmatpush1.bf16.msra.mxu0 %v1570
    %1593 = vmatprep.subr.bf16.mxu0 0
    %1594 = vmatpush1.bf16.msra.mxu0 %v1569
    %1595 = vmatprep.subr.bf16.mxu0 0
    %1596 = vmatpush1.bf16.msra.mxu0 %v1568
    %1597 = vmatprep.subr.bf16.mxu0 0
    %1598 = vmatpush1.bf16.msra.mxu0 %v1567
    %1599 = vmatprep.subr.bf16.mxu0 0
    %1600 = vmatpush2.bf16.msra.mxu0 0
    %1601 = vmatprep.subr.bf16.mxu0 0
    %1602 = vmatpush2.bf16.msra.mxu0 0
    %1603 = vmatprep.subr.bf16.mxu0 0
    %1604 = vmatpush2.bf16.msra.mxu0 0
    %1605 = vmatprep.subr.bf16.mxu0 0
    %1606 = vmatpush2.bf16.msra.mxu0 0
    %1607 = vmatprep.subr.bf16.mxu0 0
    %1608 = vmatpush2.bf16.msra.mxu0 0
    %1609 = vmatprep.subr.bf16.mxu0 0
    %1610 = vmatpush2.bf16.msra.mxu0 0
    %1611 = vmatprep.subr.bf16.mxu0 0
    %1612 = vmatpush2.bf16.msra.mxu0 0
    %1613 = vmatprep.subr.bf16.mxu0 0
    %1614 = vmatpush2.bf16.msra.mxu0 0
    %1615 = vmatprep.mubr.bf16.mxu0 0
    %1616 = vmatmul.mubr.bf16.gmra.mxu0 %v1187
    %v1617 = vpop.f32.mrf.mxu0
    %v1618 = vadd.f32 0.0, %v1617
    %v1619 = vpop.f32.mrf.mxu0
    %v1620 = vpop.f32.mrf.mxu0
    %v1621 = vadd.f32 0.0, %v1620
    %v1622 = vpop.f32.mrf.mxu0
    %1623 = vmatprep.mubr.bf16.mxu0 0
    %1624 = vmatmul.mubr.bf16.gmra.mxu0 %v1188
    %v1625 = vpop.f32.mrf.mxu0
    %v1626 = vadd.f32 0.0, %v1625
    %v1627 = vpop.f32.mrf.mxu0
    %v1628 = vpop.f32.mrf.mxu0
    %v1629 = vadd.f32 0.0, %v1628
    %v1630 = vpop.f32.mrf.mxu0
    %1631 = vmatprep.mubr.bf16.mxu0 0
    %1632 = vmatmul.mubr.bf16.gmra.mxu0 %v1189
    %v1633 = vpop.f32.mrf.mxu0
    %v1634 = vadd.f32 0.0, %v1633
    %v1635 = vpop.f32.mrf.mxu0
    %v1636 = vpop.f32.mrf.mxu0
    %v1637 = vadd.f32 0.0, %v1636
    %v1638 = vpop.f32.mrf.mxu0
    %1639 = vmatprep.mubr.bf16.mxu0 0
    %1640 = vmatmul.mubr.bf16.gmra.mxu0 %v1190
    %v1641 = vpop.f32.mrf.mxu0
    %v1642 = vadd.f32 0.0, %v1641
    %v1643 = vpop.f32.mrf.mxu0
    %v1644 = vpop.f32.mrf.mxu0
    %v1645 = vadd.f32 0.0, %v1644
    %v1646 = vpop.f32.mrf.mxu0
    %1647 = vmatprep.mubr.bf16.mxu0 0
    %1648 = vmatmul.mubr.bf16.gmra.mxu0 %v1191
    %v1649 = vpop.f32.mrf.mxu0
    %v1650 = vadd.f32 0.0, %v1649
    %v1651 = vpop.f32.mrf.mxu0
    %v1652 = vpop.f32.mrf.mxu0
    %v1653 = vadd.f32 0.0, %v1652
    %v1654 = vpop.f32.mrf.mxu0
    %1655 = vmatprep.mubr.bf16.mxu0 0
    %1656 = vmatmul.mubr.bf16.gmra.mxu0 %v1192
    %v1657 = vpop.f32.mrf.mxu0
    %v1658 = vadd.f32 0.0, %v1657
    %v1659 = vpop.f32.mrf.mxu0
    %v1660 = vpop.f32.mrf.mxu0
    %v1661 = vadd.f32 0.0, %v1660
    %v1662 = vpop.f32.mrf.mxu0
    %1663 = vmatprep.mubr.bf16.mxu0 0
    %1664 = vmatmul.mubr.bf16.gmra.mxu0 %v1193
    %v1665 = vpop.f32.mrf.mxu0
    %v1666 = vadd.f32 0.0, %v1665
    %v1667 = vpop.f32.mrf.mxu0
    %v1668 = vpop.f32.mrf.mxu0
    %v1669 = vadd.f32 0.0, %v1668
    %v1670 = vpop.f32.mrf.mxu0
    %1671 = vmatprep.mubr.bf16.mxu0 0
    %1672 = vmatmul.mubr.bf16.gmra.mxu0 %v1194
    %v1673 = vpop.f32.mrf.mxu0
    %v1674 = vadd.f32 0.0, %v1673
    %v1675 = vpop.f32.mrf.mxu0
    %v1676 = vpop.f32.mrf.mxu0
    %v1677 = vadd.f32 0.0, %v1676
    %v1678 = vpop.f32.mrf.mxu0
    %1679 = vdwg.mxu0
    %v1680 = vadd.f32 %v1456, %v1618
    %v1681 = vadd.f32 %v1459, %v1621
    %v1682 = vadd.f32 %v1464, %v1626
    %v1683 = vadd.f32 %v1467, %v1629
    %v1684 = vadd.f32 %v1472, %v1634
    %v1685 = vadd.f32 %v1475, %v1637
    %v1686 = vadd.f32 %v1480, %v1642
    %v1687 = vadd.f32 %v1483, %v1645
    %v1688 = vadd.f32 %v1488, %v1650
    %v1689 = vadd.f32 %v1491, %v1653
    %v1690 = vadd.f32 %v1496, %v1658
    %v1691 = vadd.f32 %v1499, %v1661
    %v1692 = vadd.f32 %v1504, %v1666
    %v1693 = vadd.f32 %v1507, %v1669
    %v1694 = vadd.f32 %v1512, %v1674
    %v1695 = vadd.f32 %v1515, %v1677
    %v1696 = vld [vmem:[%s5] sm:$0x1]
    %v1698 = vlaneseq
    %v1699 = vshrl.u32 %v1698, 7
    %v1700 = vsub.s32 0, %v1699
    %v1701 = vrot.slane %v1696, %v1700
    %v1703 = vadd.f32 %v1680, %v1701
    %v1704 = vadd.f32 %v1681, %v1701
    %v1705 = vadd.f32 %v1682, %v1701
    %v1706 = vadd.f32 %v1683, %v1701
    %v1707 = vadd.f32 %v1684, %v1701
    %v1708 = vadd.f32 %v1685, %v1701
    %v1709 = vadd.f32 %v1686, %v1701
    %v1710 = vadd.f32 %v1687, %v1701
    %v1711 = vadd.f32 %v1688, %v1701
    %v1712 = vadd.f32 %v1689, %v1701
    %v1713 = vadd.f32 %v1690, %v1701
    %v1714 = vadd.f32 %v1691, %v1701
    %v1715 = vadd.f32 %v1692, %v1701
    %v1716 = vadd.f32 %v1693, %v1701
    %v1717 = vadd.f32 %v1694, %v1701
    %v1718 = vadd.f32 %v1695, %v1701
    %v1719 = vmax.f32 %v1703, 0.0
    %v1720 = vmax.f32 %v1704, 0.0
    %v1721 = vmax.f32 %v1705, 0.0
    %v1722 = vmax.f32 %v1706, 0.0
    %v1723 = vmax.f32 %v1707, 0.0
    %v1724 = vmax.f32 %v1708, 0.0
    %v1725 = vmax.f32 %v1709, 0.0
    %v1726 = vmax.f32 %v1710, 0.0
    %v1727 = vmax.f32 %v1711, 0.0
    %v1728 = vmax.f32 %v1712, 0.0
    %v1729 = vmax.f32 %v1713, 0.0
    %v1730 = vmax.f32 %v1714, 0.0
    %v1731 = vmax.f32 %v1715, 0.0
    %v1732 = vmax.f32 %v1716, 0.0
    %v1733 = vmax.f32 %v1717, 0.0
    %v1734 = vmax.f32 %v1718, 0.0
    %v1735 = vpack.c.bf16 %v1720, %v1719
    %v1736 = vpack.c.bf16 %v1722, %v1721
    %v1737 = vpack.c.bf16 %v1724, %v1723
    %v1738 = vpack.c.bf16 %v1726, %v1725
    %v1739 = vpack.c.bf16 %v1728, %v1727
    %v1740 = vpack.c.bf16 %v1730, %v1729
    %v1741 = vpack.c.bf16 %v1732, %v1731
    %v1742 = vpack.c.bf16 %v1734, %v1733
    %1743 = vmatprep.subr.bf16.mxu0 0
    %1744 = vmatpush1.bf16.msra.mxu0 %v1742
    %1745 = vmatprep.subr.bf16.mxu0 0
    %1746 = vmatpush1.bf16.msra.mxu0 %v1741
    %1747 = vmatprep.subr.bf16.mxu0 0
    %1748 = vmatpush1.bf16.msra.mxu0 %v1740
    %1749 = vmatprep.subr.bf16.mxu0 0
    %1750 = vmatpush1.bf16.msra.mxu0 %v1739
    %1751 = vmatprep.subr.bf16.mxu0 0
    %1752 = vmatpush1.bf16.msra.mxu0 %v1738
    %1753 = vmatprep.subr.bf16.mxu0 0
    %1754 = vmatpush1.bf16.msra.mxu0 %v1737
    %1755 = vmatprep.subr.bf16.mxu0 0
    %1756 = vmatpush1.bf16.msra.mxu0 %v1736
    %1757 = vmatprep.subr.bf16.mxu0 0
    %1758 = vmatpush1.bf16.msra.mxu0 %v1735
    %1759 = vmatprep.subr.bf16.mxu0 0
    %1760 = vmatpush2.bf16.msra.mxu0 0
    %1761 = vmatprep.subr.bf16.mxu0 0
    %1762 = vmatpush2.bf16.msra.mxu0 0
    %1763 = vmatprep.subr.bf16.mxu0 0
    %1764 = vmatpush2.bf16.msra.mxu0 0
    %1765 = vmatprep.subr.bf16.mxu0 0
    %1766 = vmatpush2.bf16.msra.mxu0 0
    %1767 = vmatprep.subr.bf16.mxu0 0
    %1768 = vmatpush2.bf16.msra.mxu0 0
    %1769 = vmatprep.subr.bf16.mxu0 0
    %1770 = vmatpush2.bf16.msra.mxu0 0
    %1771 = vmatprep.subr.bf16.mxu0 0
    %1772 = vmatpush2.bf16.msra.mxu0 0
    %1773 = vmatprep.subr.bf16.mxu0 0
    %1774 = vmatpush2.bf16.msra.mxu0 0
    %1775 = vmatprep.mubr.bf16.mxu0 0
    %1776 = vmatmul.mubr.bf16.gmra.mxu0 %v163
    %v1777 = vpop.f32.mrf.mxu0
    %v1778 = vadd.f32 0.0, %v1777
    %v1779 = vpop.f32.mrf.mxu0
    %v1780 = vpop.f32.mrf.mxu0
    %v1781 = vadd.f32 0.0, %v1780
    %v1782 = vpop.f32.mrf.mxu0
    %1783 = vmatprep.mubr.bf16.mxu0 0
    %1784 = vmatmul.mubr.bf16.gmra.mxu0 %v164
    %v1785 = vpop.f32.mrf.mxu0
    %v1786 = vadd.f32 0.0, %v1785
    %v1787 = vpop.f32.mrf.mxu0
    %v1788 = vpop.f32.mrf.mxu0
    %v1789 = vadd.f32 0.0, %v1788
    %v1790 = vpop.f32.mrf.mxu0
    %1791 = vmatprep.mubr.bf16.mxu0 0
    %1792 = vmatmul.mubr.bf16.gmra.mxu0 %v165
    %v1793 = vpop.f32.mrf.mxu0
    %v1794 = vadd.f32 0.0, %v1793
    %v1795 = vpop.f32.mrf.mxu0
    %v1796 = vpop.f32.mrf.mxu0
    %v1797 = vadd.f32 0.0, %v1796
    %v1798 = vpop.f32.mrf.mxu0
    %1799 = vmatprep.mubr.bf16.mxu0 0
    %1800 = vmatmul.mubr.bf16.gmra.mxu0 %v166
    %v1801 = vpop.f32.mrf.mxu0
    %v1802 = vadd.f32 0.0, %v1801
    %v1803 = vpop.f32.mrf.mxu0
    %v1804 = vpop.f32.mrf.mxu0
    %v1805 = vadd.f32 0.0, %v1804
    %v1806 = vpop.f32.mrf.mxu0
    %1807 = vmatprep.mubr.bf16.mxu0 0
    %1808 = vmatmul.mubr.bf16.gmra.mxu0 %v167
    %v1809 = vpop.f32.mrf.mxu0
    %v1810 = vadd.f32 0.0, %v1809
    %v1811 = vpop.f32.mrf.mxu0
    %v1812 = vpop.f32.mrf.mxu0
    %v1813 = vadd.f32 0.0, %v1812
    %v1814 = vpop.f32.mrf.mxu0
    %1815 = vmatprep.mubr.bf16.mxu0 0
    %1816 = vmatmul.mubr.bf16.gmra.mxu0 %v168
    %v1817 = vpop.f32.mrf.mxu0
    %v1818 = vadd.f32 0.0, %v1817
    %v1819 = vpop.f32.mrf.mxu0
    %v1820 = vpop.f32.mrf.mxu0
    %v1821 = vadd.f32 0.0, %v1820
    %v1822 = vpop.f32.mrf.mxu0
    %1823 = vmatprep.mubr.bf16.mxu0 0
    %1824 = vmatmul.mubr.bf16.gmra.mxu0 %v169
    %v1825 = vpop.f32.mrf.mxu0
    %v1826 = vadd.f32 0.0, %v1825
    %v1827 = vpop.f32.mrf.mxu0
    %v1828 = vpop.f32.mrf.mxu0
    %v1829 = vadd.f32 0.0, %v1828
    %v1830 = vpop.f32.mrf.mxu0
    %1831 = vmatprep.mubr.bf16.mxu0 0
    %1832 = vmatmul.mubr.bf16.gmra.mxu0 %v170
    %v1833 = vpop.f32.mrf.mxu0
    %v1834 = vadd.f32 0.0, %v1833
    %v1835 = vpop.f32.mrf.mxu0
    %v1836 = vpop.f32.mrf.mxu0
    %v1837 = vadd.f32 0.0, %v1836
    %v1838 = vpop.f32.mrf.mxu0
    %1839 = vdwg.mxu0
    %v1840 = vpack.c.bf16 %v1781, %v1778
    %v1841 = vpack.c.bf16 %v1789, %v1786
    %v1842 = vpack.c.bf16 %v1797, %v1794
    %v1843 = vpack.c.bf16 %v1805, %v1802
    %v1844 = vpack.c.bf16 %v1813, %v1810
    %v1845 = vpack.c.bf16 %v1821, %v1818
    %v1846 = vpack.c.bf16 %v1829, %v1826
    %v1847 = vpack.c.bf16 %v1837, %v1834
    %1848 = vmatprep.subr.bf16.mxu0 0
    %1849 = vmatpush1.bf16.msra.mxu0 %v1847
    %1850 = vmatprep.subr.bf16.mxu0 0
    %1851 = vmatpush1.bf16.msra.mxu0 %v1846
    %1852 = vmatprep.subr.bf16.mxu0 0
    %1853 = vmatpush1.bf16.msra.mxu0 %v1845
    %1854 = vmatprep.subr.bf16.mxu0 0
    %1855 = vmatpush1.bf16.msra.mxu0 %v1844
    %1856 = vmatprep.subr.bf16.mxu0 0
    %1857 = vmatpush1.bf16.msra.mxu0 %v1843
    %1858 = vmatprep.subr.bf16.mxu0 0
    %1859 = vmatpush1.bf16.msra.mxu0 %v1842
    %1860 = vmatprep.subr.bf16.mxu0 0
    %1861 = vmatpush1.bf16.msra.mxu0 %v1841
    %1862 = vmatprep.subr.bf16.mxu0 0
    %1863 = vmatpush1.bf16.msra.mxu0 %v1840
    %1864 = vmatprep.subr.bf16.mxu0 0
    %1865 = vmatpush2.bf16.msra.mxu0 0
    %1866 = vmatprep.subr.bf16.mxu0 0
    %1867 = vmatpush2.bf16.msra.mxu0 0
    %1868 = vmatprep.subr.bf16.mxu0 0
    %1869 = vmatpush2.bf16.msra.mxu0 0
    %1870 = vmatprep.subr.bf16.mxu0 0
    %1871 = vmatpush2.bf16.msra.mxu0 0
    %1872 = vmatprep.subr.bf16.mxu0 0
    %1873 = vmatpush2.bf16.msra.mxu0 0
    %1874 = vmatprep.subr.bf16.mxu0 0
    %1875 = vmatpush2.bf16.msra.mxu0 0
    %1876 = vmatprep.subr.bf16.mxu0 0
    %1877 = vmatpush2.bf16.msra.mxu0 0
    %1878 = vmatprep.subr.bf16.mxu0 0
    %1879 = vmatpush2.bf16.msra.mxu0 0
    %1880 = vmatprep.mubr.bf16.mxu0 0
    %1881 = vmatmul.mubr.bf16.gmra.mxu0 %v163
    %v1882 = vpop.f32.mrf.mxu0
    %v1883 = vadd.f32 0.0, %v1882
    %v1884 = vpop.f32.mrf.mxu0
    %v1885 = vpop.f32.mrf.mxu0
    %v1886 = vadd.f32 0.0, %v1885
    %v1887 = vpop.f32.mrf.mxu0
    %1888 = vmatprep.mubr.bf16.mxu0 0
    %1889 = vmatmul.mubr.bf16.gmra.mxu0 %v164
    %v1890 = vpop.f32.mrf.mxu0
    %v1891 = vadd.f32 0.0, %v1890
    %v1892 = vpop.f32.mrf.mxu0
    %v1893 = vpop.f32.mrf.mxu0
    %v1894 = vadd.f32 0.0, %v1893
    %v1895 = vpop.f32.mrf.mxu0
    %1896 = vmatprep.mubr.bf16.mxu0 0
    %1897 = vmatmul.mubr.bf16.gmra.mxu0 %v165
    %v1898 = vpop.f32.mrf.mxu0
    %v1899 = vadd.f32 0.0, %v1898
    %v1900 = vpop.f32.mrf.mxu0
    %v1901 = vpop.f32.mrf.mxu0
    %v1902 = vadd.f32 0.0, %v1901
    %v1903 = vpop.f32.mrf.mxu0
    %1904 = vmatprep.mubr.bf16.mxu0 0
    %1905 = vmatmul.mubr.bf16.gmra.mxu0 %v166
    %v1906 = vpop.f32.mrf.mxu0
    %v1907 = vadd.f32 0.0, %v1906
    %v1908 = vpop.f32.mrf.mxu0
    %v1909 = vpop.f32.mrf.mxu0
    %v1910 = vadd.f32 0.0, %v1909
    %v1911 = vpop.f32.mrf.mxu0
    %1912 = vmatprep.mubr.bf16.mxu0 0
    %1913 = vmatmul.mubr.bf16.gmra.mxu0 %v167
    %v1914 = vpop.f32.mrf.mxu0
    %v1915 = vadd.f32 0.0, %v1914
    %v1916 = vpop.f32.mrf.mxu0
    %v1917 = vpop.f32.mrf.mxu0
    %v1918 = vadd.f32 0.0, %v1917
    %v1919 = vpop.f32.mrf.mxu0
    %1920 = vmatprep.mubr.bf16.mxu0 0
    %1921 = vmatmul.mubr.bf16.gmra.mxu0 %v168
    %v1922 = vpop.f32.mrf.mxu0
    %v1923 = vadd.f32 0.0, %v1922
    %v1924 = vpop.f32.mrf.mxu0
    %v1925 = vpop.f32.mrf.mxu0
    %v1926 = vadd.f32 0.0, %v1925
    %v1927 = vpop.f32.mrf.mxu0
    %1928 = vmatprep.mubr.bf16.mxu0 0
    %1929 = vmatmul.mubr.bf16.gmra.mxu0 %v169
    %v1930 = vpop.f32.mrf.mxu0
    %v1931 = vadd.f32 0.0, %v1930
    %v1932 = vpop.f32.mrf.mxu0
    %v1933 = vpop.f32.mrf.mxu0
    %v1934 = vadd.f32 0.0, %v1933
    %v1935 = vpop.f32.mrf.mxu0
    %1936 = vmatprep.mubr.bf16.mxu0 0
    %1937 = vmatmul.mubr.bf16.gmra.mxu0 %v170
    %v1938 = vpop.f32.mrf.mxu0
    %v1939 = vadd.f32 0.0, %v1938
    %v1940 = vpop.f32.mrf.mxu0
    %v1941 = vpop.f32.mrf.mxu0
    %v1942 = vadd.f32 0.0, %v1941
    %v1943 = vpop.f32.mrf.mxu0
    %1944 = vdwg.mxu0
    %v1945 = vpack.c.bf16 %v1886, %v1883
    %v1946 = vpack.c.bf16 %v1894, %v1891
    %v1947 = vpack.c.bf16 %v1902, %v1899
    %v1948 = vpack.c.bf16 %v1910, %v1907
    %v1949 = vpack.c.bf16 %v1918, %v1915
    %v1950 = vpack.c.bf16 %v1926, %v1923
    %v1951 = vpack.c.bf16 %v1934, %v1931
    %v1952 = vpack.c.bf16 %v1942, %v1939
    %v1953 = vld [vmem:[#allocation10] sm:$0xf]
    %v1954 = vld [vmem:[#allocation10 + $0x4] sm:$0xf]
    %v1955 = vld [vmem:[#allocation10 + $0x8] sm:$0xf]
    %v1956 = vld [vmem:[#allocation10 + $0xc] sm:$0xf]
    %v1957 = vld [vmem:[#allocation10 + $0x10] sm:$0xf]
    %v1958 = vld [vmem:[#allocation10 + $0x14] sm:$0xf]
    %v1959 = vld [vmem:[#allocation10 + $0x18] sm:$0xf]
    %v1960 = vld [vmem:[#allocation10 + $0x1c] sm:$0xf]
    %v1961 = vld [vmem:[#allocation10 + $0x20] sm:$0xf]
    %v1962 = vld [vmem:[#allocation10 + $0x24] sm:$0xf]
    %v1963 = vld [vmem:[#allocation10 + $0x28] sm:$0xf]
    %v1964 = vld [vmem:[#allocation10 + $0x2c] sm:$0xf]
    %v1965 = vld [vmem:[#allocation10 + $0x30] sm:$0xf]
    %v1966 = vld [vmem:[#allocation10 + $0x34] sm:$0xf]
    %v1967 = vld [vmem:[#allocation10 + $0x38] sm:$0xf]
    %v1968 = vld [vmem:[#allocation10 + $0x3c] sm:$0xf]
    %s1969 = scalar_lea.vmem [#allocation10], 64
    %v1970 = vld [vmem:[%s1969] sm:$0xf]
    %v1971 = vld [vmem:[%s1969 + $0x4] sm:$0xf]
    %v1972 = vld [vmem:[%s1969 + $0x8] sm:$0xf]
    %v1973 = vld [vmem:[%s1969 + $0xc] sm:$0xf]
    %v1974 = vld [vmem:[%s1969 + $0x10] sm:$0xf]
    %v1975 = vld [vmem:[%s1969 + $0x14] sm:$0xf]
    %v1976 = vld [vmem:[%s1969 + $0x18] sm:$0xf]
    %v1977 = vld [vmem:[%s1969 + $0x1c] sm:$0xf]
    %v1978 = vld [vmem:[%s1969 + $0x20] sm:$0xf]
    %v1979 = vld [vmem:[%s1969 + $0x24] sm:$0xf]
    %v1980 = vld [vmem:[%s1969 + $0x28] sm:$0xf]
    %v1981 = vld [vmem:[%s1969 + $0x2c] sm:$0xf]
    %v1982 = vld [vmem:[%s1969 + $0x30] sm:$0xf]
    %v1983 = vld [vmem:[%s1969 + $0x34] sm:$0xf]
    %v1984 = vld [vmem:[%s1969 + $0x38] sm:$0xf]
    %v1985 = vld [vmem:[%s1969 + $0x3c] sm:$0xf]
    %v2002 = vunpack.c.l.b16 %v1970
    %v2003 = vunpack.c.l.b16 %v1971
    %v2004 = vunpack.c.l.b16 %v1972
    %v2005 = vunpack.c.l.b16 %v1973
    %v2006 = vunpack.c.l.b16 %v1974
    %v2007 = vunpack.c.l.b16 %v1975
    %v2008 = vunpack.c.l.b16 %v1976
    %v2009 = vunpack.c.l.b16 %v1977
    %v2010 = vunpack.c.l.b16 %v1978
    %v2011 = vunpack.c.l.b16 %v1979
    %v2012 = vunpack.c.l.b16 %v1980
    %v2013 = vunpack.c.l.b16 %v1981
    %v2014 = vunpack.c.l.b16 %v1982
    %v2015 = vunpack.c.l.b16 %v1983
    %v2016 = vunpack.c.l.b16 %v1984
    %v2017 = vunpack.c.l.b16 %v1985
    %v2018 = vpack.c.b16 %v2003, %v2002
    %v2019 = vpack.c.b16 %v2005, %v2004
    %v2020 = vpack.c.b16 %v2007, %v2006
    %v2021 = vpack.c.b16 %v2009, %v2008
    %v2022 = vpack.c.b16 %v2011, %v2010
    %v2023 = vpack.c.b16 %v2013, %v2012
    %v2024 = vpack.c.b16 %v2015, %v2014
    %v2025 = vpack.c.b16 %v2017, %v2016
    %2034 = vmatprep.subr.bf16.mxu0 0
    %2035 = vmatpush1.bf16.msra.mxu0 %v2025
    %2036 = vmatprep.subr.bf16.mxu0 0
    %2037 = vmatpush1.bf16.msra.mxu0 %v2024
    %2038 = vmatprep.subr.bf16.mxu0 0
    %2039 = vmatpush1.bf16.msra.mxu0 %v2023
    %2040 = vmatprep.subr.bf16.mxu0 0
    %2041 = vmatpush1.bf16.msra.mxu0 %v2022
    %2042 = vmatprep.subr.bf16.mxu0 0
    %2043 = vmatpush1.bf16.msra.mxu0 %v2021
    %2044 = vmatprep.subr.bf16.mxu0 0
    %2045 = vmatpush1.bf16.msra.mxu0 %v2020
    %2046 = vmatprep.subr.bf16.mxu0 0
    %2047 = vmatpush1.bf16.msra.mxu0 %v2019
    %2048 = vmatprep.subr.bf16.mxu0 0
    %2049 = vmatpush1.bf16.msra.mxu0 %v2018
    %2050 = vmatprep.subr.bf16.mxu0 0
    %2051 = vmatpush2.bf16.msra.mxu0 0
    %2052 = vmatprep.subr.bf16.mxu0 0
    %2053 = vmatpush2.bf16.msra.mxu0 0
    %2054 = vmatprep.subr.bf16.mxu0 0
    %2055 = vmatpush2.bf16.msra.mxu0 0
    %2056 = vmatprep.subr.bf16.mxu0 0
    %2057 = vmatpush2.bf16.msra.mxu0 0
    %2058 = vmatprep.subr.bf16.mxu0 0
    %2059 = vmatpush2.bf16.msra.mxu0 0
    %2060 = vmatprep.subr.bf16.mxu0 0
    %2061 = vmatpush2.bf16.msra.mxu0 0
    %2062 = vmatprep.subr.bf16.mxu0 0
    %2063 = vmatpush2.bf16.msra.mxu0 0
    %2064 = vmatprep.subr.bf16.mxu0 0
    %2065 = vmatpush2.bf16.msra.mxu0 0
    %2066 = vmatprep.mubr.bf16.mxu0 0
    %2067 = vmatmul.mubr.bf16.gmra.mxu0 %v1840
    %v2068 = vpop.f32.mrf.mxu0
    %v2069 = vadd.f32 0.0, %v2068
    %v2070 = vpop.f32.mrf.mxu0
    %v2071 = vpop.f32.mrf.mxu0
    %v2072 = vadd.f32 0.0, %v2071
    %v2073 = vpop.f32.mrf.mxu0
    %2074 = vmatprep.mubr.bf16.mxu0 0
    %2075 = vmatmul.mubr.bf16.gmra.mxu0 %v1841
    %v2076 = vpop.f32.mrf.mxu0
    %v2077 = vadd.f32 0.0, %v2076
    %v2078 = vpop.f32.mrf.mxu0
    %v2079 = vpop.f32.mrf.mxu0
    %v2080 = vadd.f32 0.0, %v2079
    %v2081 = vpop.f32.mrf.mxu0
    %2082 = vmatprep.mubr.bf16.mxu0 0
    %2083 = vmatmul.mubr.bf16.gmra.mxu0 %v1842
    %v2084 = vpop.f32.mrf.mxu0
    %v2085 = vadd.f32 0.0, %v2084
    %v2086 = vpop.f32.mrf.mxu0
    %v2087 = vpop.f32.mrf.mxu0
    %v2088 = vadd.f32 0.0, %v2087
    %v2089 = vpop.f32.mrf.mxu0
    %2090 = vmatprep.mubr.bf16.mxu0 0
    %2091 = vmatmul.mubr.bf16.gmra.mxu0 %v1843
    %v2092 = vpop.f32.mrf.mxu0
    %v2093 = vadd.f32 0.0, %v2092
    %v2094 = vpop.f32.mrf.mxu0
    %v2095 = vpop.f32.mrf.mxu0
    %v2096 = vadd.f32 0.0, %v2095
    %v2097 = vpop.f32.mrf.mxu0
    %2098 = vmatprep.mubr.bf16.mxu0 0
    %2099 = vmatmul.mubr.bf16.gmra.mxu0 %v1844
    %v2100 = vpop.f32.mrf.mxu0
    %v2101 = vadd.f32 0.0, %v2100
    %v2102 = vpop.f32.mrf.mxu0
    %v2103 = vpop.f32.mrf.mxu0
    %v2104 = vadd.f32 0.0, %v2103
    %v2105 = vpop.f32.mrf.mxu0
    %2106 = vmatprep.mubr.bf16.mxu0 0
    %2107 = vmatmul.mubr.bf16.gmra.mxu0 %v1845
    %v2108 = vpop.f32.mrf.mxu0
    %v2109 = vadd.f32 0.0, %v2108
    %v2110 = vpop.f32.mrf.mxu0
    %v2111 = vpop.f32.mrf.mxu0
    %v2112 = vadd.f32 0.0, %v2111
    %v2113 = vpop.f32.mrf.mxu0
    %2114 = vmatprep.mubr.bf16.mxu0 0
    %2115 = vmatmul.mubr.bf16.gmra.mxu0 %v1846
    %v2116 = vpop.f32.mrf.mxu0
    %v2117 = vadd.f32 0.0, %v2116
    %v2118 = vpop.f32.mrf.mxu0
    %v2119 = vpop.f32.mrf.mxu0
    %v2120 = vadd.f32 0.0, %v2119
    %v2121 = vpop.f32.mrf.mxu0
    %2122 = vmatprep.mubr.bf16.mxu0 0
    %2123 = vmatmul.mubr.bf16.gmra.mxu0 %v1847
    %v2124 = vpop.f32.mrf.mxu0
    %v2125 = vadd.f32 0.0, %v2124
    %v2126 = vpop.f32.mrf.mxu0
    %v2127 = vpop.f32.mrf.mxu0
    %v2128 = vadd.f32 0.0, %v2127
    %v2129 = vpop.f32.mrf.mxu0
    %2130 = vdwg.mxu0
    %v2147 = vunpack.c.l.b16 %v1953
    %v2148 = vunpack.c.l.b16 %v1954
    %v2149 = vunpack.c.l.b16 %v1955
    %v2150 = vunpack.c.l.b16 %v1956
    %v2151 = vunpack.c.l.b16 %v1957
    %v2152 = vunpack.c.l.b16 %v1958
    %v2153 = vunpack.c.l.b16 %v1959
    %v2154 = vunpack.c.l.b16 %v1960
    %v2155 = vunpack.c.l.b16 %v1961
    %v2156 = vunpack.c.l.b16 %v1962
    %v2157 = vunpack.c.l.b16 %v1963
    %v2158 = vunpack.c.l.b16 %v1964
    %v2159 = vunpack.c.l.b16 %v1965
    %v2160 = vunpack.c.l.b16 %v1966
    %v2161 = vunpack.c.l.b16 %v1967
    %v2162 = vunpack.c.l.b16 %v1968
    %v2163 = vpack.c.b16 %v2148, %v2147
    %v2164 = vpack.c.b16 %v2150, %v2149
    %v2165 = vpack.c.b16 %v2152, %v2151
    %v2166 = vpack.c.b16 %v2154, %v2153
    %v2167 = vpack.c.b16 %v2156, %v2155
    %v2168 = vpack.c.b16 %v2158, %v2157
    %v2169 = vpack.c.b16 %v2160, %v2159
    %v2170 = vpack.c.b16 %v2162, %v2161
    %2179 = vmatprep.subr.bf16.mxu0 0
    %2180 = vmatpush1.bf16.msra.mxu0 %v2170
    %2181 = vmatprep.subr.bf16.mxu0 0
    %2182 = vmatpush1.bf16.msra.mxu0 %v2169
    %2183 = vmatprep.subr.bf16.mxu0 0
    %2184 = vmatpush1.bf16.msra.mxu0 %v2168
    %2185 = vmatprep.subr.bf16.mxu0 0
    %2186 = vmatpush1.bf16.msra.mxu0 %v2167
    %2187 = vmatprep.subr.bf16.mxu0 0
    %2188 = vmatpush1.bf16.msra.mxu0 %v2166
    %2189 = vmatprep.subr.bf16.mxu0 0
    %2190 = vmatpush1.bf16.msra.mxu0 %v2165
    %2191 = vmatprep.subr.bf16.mxu0 0
    %2192 = vmatpush1.bf16.msra.mxu0 %v2164
    %2193 = vmatprep.subr.bf16.mxu0 0
    %2194 = vmatpush1.bf16.msra.mxu0 %v2163
    %2195 = vmatprep.subr.bf16.mxu0 0
    %2196 = vmatpush2.bf16.msra.mxu0 0
    %2197 = vmatprep.subr.bf16.mxu0 0
    %2198 = vmatpush2.bf16.msra.mxu0 0
    %2199 = vmatprep.subr.bf16.mxu0 0
    %2200 = vmatpush2.bf16.msra.mxu0 0
    %2201 = vmatprep.subr.bf16.mxu0 0
    %2202 = vmatpush2.bf16.msra.mxu0 0
    %2203 = vmatprep.subr.bf16.mxu0 0
    %2204 = vmatpush2.bf16.msra.mxu0 0
    %2205 = vmatprep.subr.bf16.mxu0 0
    %2206 = vmatpush2.bf16.msra.mxu0 0
    %2207 = vmatprep.subr.bf16.mxu0 0
    %2208 = vmatpush2.bf16.msra.mxu0 0
    %2209 = vmatprep.subr.bf16.mxu0 0
    %2210 = vmatpush2.bf16.msra.mxu0 0
    %2211 = vmatprep.mubr.bf16.mxu0 0
    %2212 = vmatmul.mubr.bf16.gmra.mxu0 %v1735
    %v2213 = vpop.f32.mrf.mxu0
    %v2214 = vadd.f32 %v2069, %v2213
    %v2215 = vpop.f32.mrf.mxu0
    %v2216 = vpop.f32.mrf.mxu0
    %v2217 = vadd.f32 %v2072, %v2216
    %v2218 = vpop.f32.mrf.mxu0
    %2219 = vmatprep.mubr.bf16.mxu0 0
    %2220 = vmatmul.mubr.bf16.gmra.mxu0 %v1736
    %v2221 = vpop.f32.mrf.mxu0
    %v2222 = vadd.f32 %v2077, %v2221
    %v2223 = vpop.f32.mrf.mxu0
    %v2224 = vpop.f32.mrf.mxu0
    %v2225 = vadd.f32 %v2080, %v2224
    %v2226 = vpop.f32.mrf.mxu0
    %2227 = vmatprep.mubr.bf16.mxu0 0
    %2228 = vmatmul.mubr.bf16.gmra.mxu0 %v1737
    %v2229 = vpop.f32.mrf.mxu0
    %v2230 = vadd.f32 %v2085, %v2229
    %v2231 = vpop.f32.mrf.mxu0
    %v2232 = vpop.f32.mrf.mxu0
    %v2233 = vadd.f32 %v2088, %v2232
    %v2234 = vpop.f32.mrf.mxu0
    %2235 = vmatprep.mubr.bf16.mxu0 0
    %2236 = vmatmul.mubr.bf16.gmra.mxu0 %v1738
    %v2237 = vpop.f32.mrf.mxu0
    %v2238 = vadd.f32 %v2093, %v2237
    %v2239 = vpop.f32.mrf.mxu0
    %v2240 = vpop.f32.mrf.mxu0
    %v2241 = vadd.f32 %v2096, %v2240
    %v2242 = vpop.f32.mrf.mxu0
    %2243 = vmatprep.mubr.bf16.mxu0 0
    %2244 = vmatmul.mubr.bf16.gmra.mxu0 %v1739
    %v2245 = vpop.f32.mrf.mxu0
    %v2246 = vadd.f32 %v2101, %v2245
    %v2247 = vpop.f32.mrf.mxu0
    %v2248 = vpop.f32.mrf.mxu0
    %v2249 = vadd.f32 %v2104, %v2248
    %v2250 = vpop.f32.mrf.mxu0
    %2251 = vmatprep.mubr.bf16.mxu0 0
    %2252 = vmatmul.mubr.bf16.gmra.mxu0 %v1740
    %v2253 = vpop.f32.mrf.mxu0
    %v2254 = vadd.f32 %v2109, %v2253
    %v2255 = vpop.f32.mrf.mxu0
    %v2256 = vpop.f32.mrf.mxu0
    %v2257 = vadd.f32 %v2112, %v2256
    %v2258 = vpop.f32.mrf.mxu0
    %2259 = vmatprep.mubr.bf16.mxu0 0
    %2260 = vmatmul.mubr.bf16.gmra.mxu0 %v1741
    %v2261 = vpop.f32.mrf.mxu0
    %v2262 = vadd.f32 %v2117, %v2261
    %v2263 = vpop.f32.mrf.mxu0
    %v2264 = vpop.f32.mrf.mxu0
    %v2265 = vadd.f32 %v2120, %v2264
    %v2266 = vpop.f32.mrf.mxu0
    %2267 = vmatprep.mubr.bf16.mxu0 0
    %2268 = vmatmul.mubr.bf16.gmra.mxu0 %v1742
    %v2269 = vpop.f32.mrf.mxu0
    %v2270 = vadd.f32 %v2125, %v2269
    %v2271 = vpop.f32.mrf.mxu0
    %v2272 = vpop.f32.mrf.mxu0
    %v2273 = vadd.f32 %v2128, %v2272
    %v2274 = vpop.f32.mrf.mxu0
    %2275 = vdwg.mxu0
    %s2276 = scalar_lea.vmem [#allocation10], 128
    %v2277 = vld [vmem:[%s2276] sm:$0xf]
    %v2278 = vld [vmem:[%s2276 + $0x4] sm:$0xf]
    %v2279 = vld [vmem:[%s2276 + $0x8] sm:$0xf]
    %v2280 = vld [vmem:[%s2276 + $0xc] sm:$0xf]
    %v2281 = vld [vmem:[%s2276 + $0x10] sm:$0xf]
    %v2282 = vld [vmem:[%s2276 + $0x14] sm:$0xf]
    %v2283 = vld [vmem:[%s2276 + $0x18] sm:$0xf]
    %v2284 = vld [vmem:[%s2276 + $0x1c] sm:$0xf]
    %v2285 = vld [vmem:[%s2276 + $0x20] sm:$0xf]
    %v2286 = vld [vmem:[%s2276 + $0x24] sm:$0xf]
    %v2287 = vld [vmem:[%s2276 + $0x28] sm:$0xf]
    %v2288 = vld [vmem:[%s2276 + $0x2c] sm:$0xf]
    %v2289 = vld [vmem:[%s2276 + $0x30] sm:$0xf]
    %v2290 = vld [vmem:[%s2276 + $0x34] sm:$0xf]
    %v2291 = vld [vmem:[%s2276 + $0x38] sm:$0xf]
    %v2292 = vld [vmem:[%s2276 + $0x3c] sm:$0xf]
    %v2309 = vunpack.c.l.b16 %v2277
    %v2310 = vunpack.c.l.b16 %v2278
    %v2311 = vunpack.c.l.b16 %v2279
    %v2312 = vunpack.c.l.b16 %v2280
    %v2313 = vunpack.c.l.b16 %v2281
    %v2314 = vunpack.c.l.b16 %v2282
    %v2315 = vunpack.c.l.b16 %v2283
    %v2316 = vunpack.c.l.b16 %v2284
    %v2317 = vunpack.c.l.b16 %v2285
    %v2318 = vunpack.c.l.b16 %v2286
    %v2319 = vunpack.c.l.b16 %v2287
    %v2320 = vunpack.c.l.b16 %v2288
    %v2321 = vunpack.c.l.b16 %v2289
    %v2322 = vunpack.c.l.b16 %v2290
    %v2323 = vunpack.c.l.b16 %v2291
    %v2324 = vunpack.c.l.b16 %v2292
    %v2325 = vpack.c.b16 %v2310, %v2309
    %v2326 = vpack.c.b16 %v2312, %v2311
    %v2327 = vpack.c.b16 %v2314, %v2313
    %v2328 = vpack.c.b16 %v2316, %v2315
    %v2329 = vpack.c.b16 %v2318, %v2317
    %v2330 = vpack.c.b16 %v2320, %v2319
    %v2331 = vpack.c.b16 %v2322, %v2321
    %v2332 = vpack.c.b16 %v2324, %v2323
    %2341 = vmatprep.subr.bf16.mxu0 0
    %2342 = vmatpush1.bf16.msra.mxu0 %v2332
    %2343 = vmatprep.subr.bf16.mxu0 0
    %2344 = vmatpush1.bf16.msra.mxu0 %v2331
    %2345 = vmatprep.subr.bf16.mxu0 0
    %2346 = vmatpush1.bf16.msra.mxu0 %v2330
    %2347 = vmatprep.subr.bf16.mxu0 0
    %2348 = vmatpush1.bf16.msra.mxu0 %v2329
    %2349 = vmatprep.subr.bf16.mxu0 0
    %2350 = vmatpush1.bf16.msra.mxu0 %v2328
    %2351 = vmatprep.subr.bf16.mxu0 0
    %2352 = vmatpush1.bf16.msra.mxu0 %v2327
    %2353 = vmatprep.subr.bf16.mxu0 0
    %2354 = vmatpush1.bf16.msra.mxu0 %v2326
    %2355 = vmatprep.subr.bf16.mxu0 0
    %2356 = vmatpush1.bf16.msra.mxu0 %v2325
    %2357 = vmatprep.subr.bf16.mxu0 0
    %2358 = vmatpush2.bf16.msra.mxu0 0
    %2359 = vmatprep.subr.bf16.mxu0 0
    %2360 = vmatpush2.bf16.msra.mxu0 0
    %2361 = vmatprep.subr.bf16.mxu0 0
    %2362 = vmatpush2.bf16.msra.mxu0 0
    %2363 = vmatprep.subr.bf16.mxu0 0
    %2364 = vmatpush2.bf16.msra.mxu0 0
    %2365 = vmatprep.subr.bf16.mxu0 0
    %2366 = vmatpush2.bf16.msra.mxu0 0
    %2367 = vmatprep.subr.bf16.mxu0 0
    %2368 = vmatpush2.bf16.msra.mxu0 0
    %2369 = vmatprep.subr.bf16.mxu0 0
    %2370 = vmatpush2.bf16.msra.mxu0 0
    %2371 = vmatprep.subr.bf16.mxu0 0
    %2372 = vmatpush2.bf16.msra.mxu0 0
    %2373 = vmatprep.mubr.bf16.mxu0 0
    %2374 = vmatmul.mubr.bf16.gmra.mxu0 %v1945
    %v2375 = vpop.f32.mrf.mxu0
    %v2376 = vadd.f32 0.0, %v2375
    %v2377 = vpop.f32.mrf.mxu0
    %v2378 = vpop.f32.mrf.mxu0
    %v2379 = vadd.f32 0.0, %v2378
    %v2380 = vpop.f32.mrf.mxu0
    %2381 = vmatprep.mubr.bf16.mxu0 0
    %2382 = vmatmul.mubr.bf16.gmra.mxu0 %v1946
    %v2383 = vpop.f32.mrf.mxu0
    %v2384 = vadd.f32 0.0, %v2383
    %v2385 = vpop.f32.mrf.mxu0
    %v2386 = vpop.f32.mrf.mxu0
    %v2387 = vadd.f32 0.0, %v2386
    %v2388 = vpop.f32.mrf.mxu0
    %2389 = vmatprep.mubr.bf16.mxu0 0
    %2390 = vmatmul.mubr.bf16.gmra.mxu0 %v1947
    %v2391 = vpop.f32.mrf.mxu0
    %v2392 = vadd.f32 0.0, %v2391
    %v2393 = vpop.f32.mrf.mxu0
    %v2394 = vpop.f32.mrf.mxu0
    %v2395 = vadd.f32 0.0, %v2394
    %v2396 = vpop.f32.mrf.mxu0
    %2397 = vmatprep.mubr.bf16.mxu0 0
    %2398 = vmatmul.mubr.bf16.gmra.mxu0 %v1948
    %v2399 = vpop.f32.mrf.mxu0
    %v2400 = vadd.f32 0.0, %v2399
    %v2401 = vpop.f32.mrf.mxu0
    %v2402 = vpop.f32.mrf.mxu0
    %v2403 = vadd.f32 0.0, %v2402
    %v2404 = vpop.f32.mrf.mxu0
    %2405 = vmatprep.mubr.bf16.mxu0 0
    %2406 = vmatmul.mubr.bf16.gmra.mxu0 %v1949
    %v2407 = vpop.f32.mrf.mxu0
    %v2408 = vadd.f32 0.0, %v2407
    %v2409 = vpop.f32.mrf.mxu0
    %v2410 = vpop.f32.mrf.mxu0
    %v2411 = vadd.f32 0.0, %v2410
    %v2412 = vpop.f32.mrf.mxu0
    %2413 = vmatprep.mubr.bf16.mxu0 0
    %2414 = vmatmul.mubr.bf16.gmra.mxu0 %v1950
    %v2415 = vpop.f32.mrf.mxu0
    %v2416 = vadd.f32 0.0, %v2415
    %v2417 = vpop.f32.mrf.mxu0
    %v2418 = vpop.f32.mrf.mxu0
    %v2419 = vadd.f32 0.0, %v2418
    %v2420 = vpop.f32.mrf.mxu0
    %2421 = vmatprep.mubr.bf16.mxu0 0
    %2422 = vmatmul.mubr.bf16.gmra.mxu0 %v1951
    %v2423 = vpop.f32.mrf.mxu0
    %v2424 = vadd.f32 0.0, %v2423
    %v2425 = vpop.f32.mrf.mxu0
    %v2426 = vpop.f32.mrf.mxu0
    %v2427 = vadd.f32 0.0, %v2426
    %v2428 = vpop.f32.mrf.mxu0
    %2429 = vmatprep.mubr.bf16.mxu0 0
    %2430 = vmatmul.mubr.bf16.gmra.mxu0 %v1952
    %v2431 = vpop.f32.mrf.mxu0
    %v2432 = vadd.f32 0.0, %v2431
    %v2433 = vpop.f32.mrf.mxu0
    %v2434 = vpop.f32.mrf.mxu0
    %v2435 = vadd.f32 0.0, %v2434
    %v2436 = vpop.f32.mrf.mxu0
    %2437 = vdwg.mxu0
    %v2438 = vadd.f32 %v2214, %v2376
    %v2439 = vadd.f32 %v2217, %v2379
    %v2440 = vadd.f32 %v2222, %v2384
    %v2441 = vadd.f32 %v2225, %v2387
    %v2442 = vadd.f32 %v2230, %v2392
    %v2443 = vadd.f32 %v2233, %v2395
    %v2444 = vadd.f32 %v2238, %v2400
    %v2445 = vadd.f32 %v2241, %v2403
    %v2446 = vadd.f32 %v2246, %v2408
    %v2447 = vadd.f32 %v2249, %v2411
    %v2448 = vadd.f32 %v2254, %v2416
    %v2449 = vadd.f32 %v2257, %v2419
    %v2450 = vadd.f32 %v2262, %v2424
    %v2451 = vadd.f32 %v2265, %v2427
    %v2452 = vadd.f32 %v2270, %v2432
    %v2453 = vadd.f32 %v2273, %v2435
    %v2454 = vld [vmem:[%s7] sm:$0x1]
    %v2456 = vlaneseq
    %v2457 = vshrl.u32 %v2456, 7
    %v2458 = vsub.s32 0, %v2457
    %v2459 = vrot.slane %v2454, %v2458
    %v2461 = vadd.f32 %v2438, %v2459
    %v2462 = vadd.f32 %v2439, %v2459
    %v2463 = vadd.f32 %v2440, %v2459
    %v2464 = vadd.f32 %v2441, %v2459
    %v2465 = vadd.f32 %v2442, %v2459
    %v2466 = vadd.f32 %v2443, %v2459
    %v2467 = vadd.f32 %v2444, %v2459
    %v2468 = vadd.f32 %v2445, %v2459
    %v2469 = vadd.f32 %v2446, %v2459
    %v2470 = vadd.f32 %v2447, %v2459
    %v2471 = vadd.f32 %v2448, %v2459
    %v2472 = vadd.f32 %v2449, %v2459
    %v2473 = vadd.f32 %v2450, %v2459
    %v2474 = vadd.f32 %v2451, %v2459
    %v2475 = vadd.f32 %v2452, %v2459
    %v2476 = vadd.f32 %v2453, %v2459
    %2477 = vst [vmem:[#allocation11] sm:$0xff] %v2461
    %2478 = vst [vmem:[#allocation11 + $0x8] sm:$0xff] %v2462
    %2479 = vst [vmem:[#allocation11 + $0x10] sm:$0xff] %v2463
    %2480 = vst [vmem:[#allocation11 + $0x18] sm:$0xff] %v2464
    %2481 = vst [vmem:[#allocation11 + $0x20] sm:$0xff] %v2465
    %2482 = vst [vmem:[#allocation11 + $0x28] sm:$0xff] %v2466
    %2483 = vst [vmem:[#allocation11 + $0x30] sm:$0xff] %v2467
    %2484 = vst [vmem:[#allocation11 + $0x38] sm:$0xff] %v2468
    %2485 = vst [vmem:[#allocation11 + $0x40] sm:$0xff] %v2469
    %2486 = vst [vmem:[#allocation11 + $0x48] sm:$0xff] %v2470
    %2487 = vst [vmem:[#allocation11 + $0x50] sm:$0xff] %v2471
    %2488 = vst [vmem:[#allocation11 + $0x58] sm:$0xff] %v2472
    %2489 = vst [vmem:[#allocation11 + $0x60] sm:$0xff] %v2473
    %2490 = vst [vmem:[#allocation11 + $0x68] sm:$0xff] %v2474
    %2491 = vst [vmem:[#allocation11 + $0x70] sm:$0xff] %v2475
    %2492 = vst [vmem:[#allocation11 + $0x78] sm:$0xff] %v2476
    // Predicated region
    $region54: #{tpu_custom_call.1} parent=1 // pred_check
      _
    $region55: #{tpu_custom_call.1} parent=1 // pred_check_branch
      %2494 = sbr.rel (0) target = $region57
    $region56: #{tpu_custom_call.1} parent=1 // pred_region
      %s2496 = ssub.s32 2048, 2048
      %2497 = vsyncadd [#allocation4], %s2496
      %s2498 = sshll.u32 [#allocation11], 4
      %s2499 = int_to_ptr.vmem [resolvable:$true] %s2498
      %2504 = dma.vmem_to_hbm [thread:$0]  %s2499, 2048, %s8, [#allocation4], 128, 128, 8
    $region57: #{tpu_custom_call.1} parent=1 // pred_fallthru
      _
    // Predicated region
    $region58: #{tpu_custom_call.1} parent=1 // pred_check
      _
    $region59: #{tpu_custom_call.1} parent=1 // pred_check_branch
      %2506 = sbr.rel (0) target = $region61
    $region60: #{tpu_custom_call.1} parent=1 // pred_region
      %2507 = dma.done [#allocation4], 2048
    $region61: #{tpu_custom_call.1} parent=1 // pred_fallthru
      _
    %2508 = vsyncpa [#allocation3], 1
    %2509 = vsyncpa [#allocation6], 1
    %2510 = vsyncpa [#allocation9], 1
    %2511 = vsyncpa [#allocation4], 1

</llo_original>
